<compile_context>
chip_gen: v7x
topology: tpu7x:2x2x1
jax: 0.10.0
libtpu: 0.0.40
codegen_flags: <defaults>
</compile_context>

<pallas_src>
import functools
import math

import jax
import jax.numpy as jnp
import numpy as np
from jax.experimental import pallas as pl
from jax.experimental.pallas import tpu as pltpu


def _round_up(x, m):
    return (x + m - 1) // m * m


def _cdiv(a, b):
    return (a + b - 1) // b


def _features_rbf_kernel(xt_ref, s_ref, c_ref, w_ref, b_ref, o_ref):
    """One grid step over a row-tile of lane-packed elements.

    xt_ref: (F*P, TR)        transposed dense x; slot f*P+j holds feature f of
                             packed element j of each row (TR rows -> TR*P elems)
    s_ref:  (F*P, P*K_total) constant selection matrix, entries sqrt(gamma_f)
    c_ref:  (1, P*K_total)   sqrt(gamma_f) * centers, lane-tiled P times
    w_ref:  (P*K_total, P*D) block-diagonal concatenated Linear weights
    b_ref:  (1, P*D)         sum-over-features bias, lane-tiled P times
    o_ref:  (TR, P*D)        lane-dense output tile (P elements per row)
    """
    x = xt_ref[...].astype(jnp.float32).T            # (TR, F*P), cheap XLU transpose
    # Exact lane expansion + sqrt(gamma) scaling on the MXU (HIGHEST keeps it
    # bit-faithful to f32; the 0-entries of S contribute exactly 0).
    xs = jnp.dot(x, s_ref[...],
                 preferred_element_type=jnp.float32,
                 precision=jax.lax.Precision.HIGHEST)  # (TR, P*K_total)
    t = xs - c_ref[...]                                # sqrt(g)*(x - c)
    rbf = jnp.exp(-(t * t))                            # FixedRBF, values in (0, 1]
    y = jnp.dot(rbf, w_ref[...],                       # single fused MXU matmul
                preferred_element_type=jnp.float32,
                precision=jax.lax.Precision.HIGHEST)
    o_ref[...] = y + b_ref[...]


def features_rbf_forward(x_list, sel, c_scaled, weight, bias,
                         num_elements, output_dim, pack, k_total,
                         *, tile_elems=32768, vmem_budget_bytes=24 * 1024 * 1024):
    """Fused forward: sum_f Linear_f(FixedRBF_f(x_f)) -> (num_elements, output_dim)."""
    P = int(pack)
    F = len(x_list)
    fp = F * P
    pk = P * int(k_total)
    pd = P * int(output_dim)

    rows_min = max(1, _cdiv(int(num_elements), P))

    # --- tiling: VMEM-budgeted, multiple-of-128 rows, exact grid division,
    #     >=2 steps when there is enough work (v7x megacore). ---
    bytes_per_row = (pd * 4) * 2 + (fp * 4) * 2 + (3 * pk + 128) * 4
    tr_cap = max(128, (vmem_budget_bytes // bytes_per_row) // 128 * 128)
    tr_max = max(128, min(_round_up(max(1, tile_elems // P), 128), tr_cap))
    nsteps = max(1, _cdiv(rows_min, tr_max))
    if rows_min > 128:
        nsteps = max(nsteps, 2)                       # let both v7x TCs work
    tile_rows = _round_up(_cdiv(rows_min, nsteps), 128)
    rows = tile_rows * nsteps                         # grid divides exactly
    n_pad = rows * P                                  # padded rows: finite, sliced off

    # --- dense transposed x: (F*P, rows); x_t[f*P + j, r] = x_f[r*P + j].
    #     second-minor dim = F*P, so no (8,128) lane padding in HBM/VMEM. ---
    cols = []
    for x in x_list:
        x = x.reshape(-1).astype(jnp.float32)
        pad = n_pad - x.shape[0]
        if pad:
            x = jnp.pad(x, (0, pad))
        cols.append(x.reshape(rows, P).T)             # (P, rows)
    x_t = jnp.concatenate(cols, axis=0)               # (F*P, rows)

    out_packed = pl.pallas_call(
        _features_rbf_kernel,
        out_shape=jax.ShapeDtypeStruct((rows, pd), jnp.float32),
        grid_spec=pltpu.PrefetchScalarGridSpec(
            num_scalar_prefetch=0,
            grid=(nsteps,),
            in_specs=[
                pl.BlockSpec((fp, tile_rows), lambda i: (0, i)),   # x (dense, tiled)
                pl.BlockSpec((fp, pk), lambda i: (0, 0)),          # selection (resident)
                pl.BlockSpec((1, pk), lambda i: (0, 0)),           # scaled centers
                pl.BlockSpec((pk, pd), lambda i: (0, 0)),          # weight (resident)
                pl.BlockSpec((1, pd), lambda i: (0, 0)),           # bias (resident)
            ],
            out_specs=pl.BlockSpec((tile_rows, pd), lambda i: (i, 0)),
        ),
        compiler_params=pltpu.CompilerParams(
            dimension_semantics=("parallel",),        # megacore-shardable element axis
            vmem_limit_bytes=32 * 1024 * 1024,        # explicit budget (fits v7x's 64 MiB)
        ),
    )(x_t, sel, c_scaled, weight, bias)

    out = out_packed.reshape(n_pad, output_dim)       # free row-major reshape
    if n_pad != num_elements:
        out = out[:num_elements]
    return out


class FeaturesRBFPallas:
    """Pallas equivalent of FeaturesRBF.

    float_feat_list: list of (name, rbf_centers: 1-D array, rbf_gamma: float)
    Linear weights are initialised deterministically (uniform in
    [-1/sqrt(K), 1/sqrt(K)], matching nn.Linear's default bound).
    """

    def __init__(self, float_feat_list, output_dim, key):
        self.output_dim = int(output_dim)
        self.params = {}
        for name, centers, gamma in float_feat_list:
            K = int(centers.shape[0])
            key, kw, kb = jax.random.split(key, 3)
            bound = 1.0 / math.sqrt(K)
            w = jax.random.uniform(kw, (K, output_dim), jnp.float32, -bound, bound)
            b = jax.random.uniform(kb, (output_dim,), jnp.float32, -bound, bound)
            self.params[name] = (jnp.asarray(centers, jnp.float32), float(gamma), w, b)
        self._packed_cache = {}

    def _pack_params(self, names):
        """Concatenate + lane-pack the constant operands for a feature subset (once)."""
        names = tuple(names)
        if names in self._packed_cache:
            return self._packed_cache[names]

        D = self.output_dim
        pack = 128 // math.gcd(D, 128)       # pack*D is always a multiple of 128
        k_sizes = [int(self.params[n][0].shape[0]) for n in names]
        k_total = int(sum(k_sizes))
        F = len(names)
        fp, pk, pd = F * pack, pack * k_total, pack * D
        offs = np.cumsum([0] + k_sizes)

        sel = np.zeros((fp, pk), np.float32)       # sqrt(gamma) selection matrix
        c_scaled = np.zeros((pk,), np.float32)     # sqrt(gamma) * centers per lane
        w_wide = np.zeros((pk, pd), np.float32)    # block-diagonal concatenated W
        b_sum = np.zeros((D,), np.float32)
        for f, n in enumerate(names):
            centers, gamma, w, b = self.params[n]
            centers = np.asarray(centers, np.float32)
            sg = np.float32(math.sqrt(gamma))
            b_sum += np.asarray(b, np.float32)
            for j in range(pack):
                lo = j * k_total + int(offs[f])
                hi = j * k_total + int(offs[f + 1])
                sel[f * pack + j, lo:hi] = sg
                c_scaled[lo:hi] = sg * centers
                w_wide[lo:hi, j * D:(j + 1) * D] = np.asarray(w, np.float32)

        packed = dict(
            pack=pack, k_total=k_total,
            sel=jnp.asarray(sel),
            c_scaled=jnp.asarray(c_scaled[None, :]),
            weight=jnp.asarray(w_wide),
            bias=jnp.asarray(np.tile(b_sum, pack)[None, :]),
        )
        self._packed_cache[names] = packed
        return packed

    def __call__(self, feat_tensor_map):
        feat_values = list(feat_tensor_map.values())
        num_elements = int(feat_values[0].shape[0])
        present = [n for n in feat_tensor_map if n in self.params]   # skip unknown feats
        if not present:
            return jnp.zeros((num_elements, self.output_dim), jnp.float32)
        p = self._pack_params(present)
        xs = [feat_tensor_map[n] for n in present]
        return features_rbf_forward(
            xs, p["sel"], p["c_scaled"], p["weight"], p["bias"],
            num_elements, self.output_dim, p["pack"], p["k_total"])


def _reference(feat_tensor_map, params, output_dim):
    """Pure-JAX reference matching the PyTorch forward."""
    feat_values = list(feat_tensor_map.values())
    n = feat_values[0].shape[0]
    out = jnp.zeros((n, output_dim), jnp.float32)
    for name, x in feat_tensor_map.items():
        if name not in params:
            continue
        centers, gamma, w, b = params[name]
        xf = x.reshape(-1, 1).astype(jnp.float32)
        diff = xf - centers[None, :]
        rbf = jnp.exp(-gamma * diff * diff)
        out = out + jnp.dot(rbf, w, precision=jax.lax.Precision.HIGHEST) + b[None, :]
    return out


if __name__ == "__main__":
    key = jax.random.PRNGKey(0)

    output_dim = 32

    # Two float features with different RBF configs (a la bond_length /
    # bond_angle in GeoGNN).
    bond_length_centers = jnp.arange(0.0, 2.0, 0.125, dtype=jnp.float32)   # K = 16
    bond_angle_centers = jnp.arange(0.0, 3.2, 0.4, dtype=jnp.float32)      # K = 8
    float_feat_list = [
        ("bond_length", bond_length_centers, 10.0),
        ("bond_angle", bond_angle_centers, 10.0),
    ]

    key, k_mod = jax.random.split(key)
    model = FeaturesRBFPallas(float_feat_list, output_dim, k_mod)

    # N=128 exact single block, N=100 exercises the pad/slice path,
    # N=600 exercises the multi-step ("parallel") grid path.
    for num_elements in (128, 100, 600):
        kl, ka = jax.random.split(jax.random.fold_in(key, num_elements))
        feat_tensor_map = {
            "bond_length": jax.random.uniform(kl, (num_elements,), jnp.float32, 0.0, 2.0),
            "bond_angle": jax.random.uniform(ka, (num_elements,), jnp.float32, 0.0, 3.14),
            # Feature not present in module_dict -> skipped, like in the PyTorch code.
            "unused_feat": jnp.zeros((num_elements,), jnp.float32),
        }

        out = jax.block_until_ready(model(feat_tensor_map))
        ref = _reference(feat_tensor_map, model.params, output_dim)

        assert out.shape == (num_elements, output_dim)
        assert out.dtype == jnp.float32
        assert jnp.allclose(out, ref, atol=1e-5, rtol=1e-5), "mismatch vs reference"

    print("KERNEL_OK")
</pallas_src>

<mosaic_0001>
module attributes {stable_mosaic.version = 11 : i64} {
  func.func @_features_rbf_kernel(%arg0: i32, %arg1: memref<8x128xf32, #tpu.memory_space<vmem>>, %arg2: memref<8x96xf32, #tpu.memory_space<vmem>>, %arg3: memref<1x96xf32, #tpu.memory_space<vmem>>, %arg4: memref<96x128xf32, #tpu.memory_space<vmem>>, %arg5: memref<1x128xf32, #tpu.memory_space<vmem>>, %arg6: memref<128x128xf32, #tpu.memory_space<vmem>>) attributes {dimension_semantics = [#tpu.dimension_semantics<parallel>], iteration_bounds = array<i64: 1>, scalar_prefetch = 0 : i64, scratch_operands = 0 : i64, tpu.core_type = #tpu.core_type<tc>, window_params = [{transform_indices = @transform_0, window_bounds = array<i64: 8, 128>}, {pipeline_mode = #tpu.pipeline_mode<synchronous>, transform_indices = @transform_1, window_bounds = array<i64: 8, 96>}, {pipeline_mode = #tpu.pipeline_mode<synchronous>, transform_indices = @transform_2, window_bounds = array<i64: 1, 96>}, {pipeline_mode = #tpu.pipeline_mode<synchronous>, transform_indices = @transform_3, window_bounds = array<i64: 96, 128>}, {pipeline_mode = #tpu.pipeline_mode<synchronous>, transform_indices = @transform_4, window_bounds = array<i64: 1, 128>}, {transform_indices = @transform_5, window_bounds = array<i64: 128, 128>}]} {
    %c0 = arith.constant 0 : index
    %c0_0 = arith.constant 0 : index
    %0 = vector.load %arg1[%c0, %c0_0] : memref<8x128xf32, #tpu.memory_space<vmem>>, vector<8x128xf32>
    %1 = tpu.transpose %0, [1, 0] : vector<8x128xf32> -> vector<128x8xf32>
    %c0_1 = arith.constant 0 : index
    %c0_2 = arith.constant 0 : index
    %2 = vector.load %arg2[%c0_1, %c0_2] : memref<8x96xf32, #tpu.memory_space<vmem>>, vector<8x96xf32>
    %cst = arith.constant dense<0.000000e+00> : vector<128x96xf32>
    %3 = tpu.matmul %1, %2, %cst {dimension_numbers = #tpu.dot_dimension_numbers<[1], [0], [0], [1], [0, 0, 1, 1], [], []>, precision = #tpu.contract_precision<fp32>} : vector<128x8xf32>, vector<8x96xf32>, vector<128x96xf32> -> vector<128x96xf32>
    %c0_3 = arith.constant 0 : index
    %c0_4 = arith.constant 0 : index
    %4 = vector.load %arg3[%c0_3, %c0_4] : memref<1x96xf32, #tpu.memory_space<vmem>>, vector<1x96xf32>
    %5 = vector.broadcast %4 : vector<1x96xf32> to vector<128x96xf32>
    %6 = arith.subf %3, %5 : vector<128x96xf32>
    %7 = arith.mulf %6, %6 : vector<128x96xf32>
    %cst_5 = arith.constant 0.000000e+00 : f32
    %8 = vector.broadcast %cst_5 : f32 to vector<128x96xf32>
    %9 = arith.subf %8, %7 : vector<128x96xf32>
    %10 = math.exp %9 : vector<128x96xf32>
    %c0_6 = arith.constant 0 : index
    %c0_7 = arith.constant 0 : index
    %11 = vector.load %arg4[%c0_6, %c0_7] : memref<96x128xf32, #tpu.memory_space<vmem>>, vector<96x128xf32>
    %cst_8 = arith.constant dense<0.000000e+00> : vector<128x128xf32>
    %12 = tpu.matmul %10, %11, %cst_8 {dimension_numbers = #tpu.dot_dimension_numbers<[1], [0], [0], [1], [0, 0, 1, 1], [], []>, precision = #tpu.contract_precision<fp32>} : vector<128x96xf32>, vector<96x128xf32>, vector<128x128xf32> -> vector<128x128xf32>
    %c0_9 = arith.constant 0 : index
    %c0_10 = arith.constant 0 : index
    %13 = vector.load %arg5[%c0_9, %c0_10] : memref<1x128xf32, #tpu.memory_space<vmem>>, vector<1x128xf32>
    %14 = vector.broadcast %13 : vector<1x128xf32> to vector<128x128xf32>
    %15 = arith.addf %12, %14 : vector<128x128xf32>
    %c0_11 = arith.constant 0 : index
    %c0_12 = arith.constant 0 : index
    %16 = vector.load %arg6[%c0_11, %c0_12] : memref<128x128xf32, #tpu.memory_space<vmem>>, vector<128x128xf32>
    tpu.vector_store %arg6[%c0_11, %c0_12], %15 {strides = array<i32>} : memref<128x128xf32, #tpu.memory_space<vmem>>, vector<128x128xf32>,
    return
  }
  func.func @transform_0(%arg0: i32) -> (i32, i32) {
    %c0_i32 = arith.constant 0 : i32
    %c0_i32_0 = arith.constant 0 : i32
    return %c0_i32, %arg0 : i32, i32
  }
  func.func @transform_1(%arg0: i32) -> (i32, i32) {
    %c0_i32 = arith.constant 0 : i32
    %c0_i32_0 = arith.constant 0 : i32
    %c0_i32_1 = arith.constant 0 : i32
    return %c0_i32, %c0_i32_0 : i32, i32
  }
  func.func @transform_2(%arg0: i32) -> (i32, i32) {
    %c0_i32 = arith.constant 0 : i32
    %c0_i32_0 = arith.constant 0 : i32
    %c0_i32_1 = arith.constant 0 : i32
    return %c0_i32, %c0_i32_0 : i32, i32
  }
  func.func @transform_3(%arg0: i32) -> (i32, i32) {
    %c0_i32 = arith.constant 0 : i32
    %c0_i32_0 = arith.constant 0 : i32
    %c0_i32_1 = arith.constant 0 : i32
    return %c0_i32, %c0_i32_0 : i32, i32
  }
  func.func @transform_4(%arg0: i32) -> (i32, i32) {
    %c0_i32 = arith.constant 0 : i32
    %c0_i32_0 = arith.constant 0 : i32
    %c0_i32_1 = arith.constant 0 : i32
    return %c0_i32, %c0_i32_0 : i32, i32
  }
  func.func @transform_5(%arg0: i32) -> (i32, i32) {
    %c0_i32 = arith.constant 0 : i32
    %c0_i32_0 = arith.constant 0 : i32
    return %arg0, %c0_i32 : i32, i32
  }
}

</mosaic_0001>

<llo_original>
// kernel: tpu_custom_call.1
$region0: #{tpu_custom_call.1}
  #allocation0 [shape = 'u32[]', space=smem, size = 0x4, offset = 0x4, fixed_abs, tag = 'smem constant byte address 0x4 - core index']
  #allocation1 [shape = 'u32[144,128]{1,0:T(1,128)}', space=vmem, size = 0x12000, scoped, tag = 'internal scratch']
  %s0 = inlined_call_operand.hbm [shape: f32[8,128], index: 0, kind: input, shape index: {}]
  %s1 = inlined_call_operand.hbm [shape: f32[8,96], index: 1, kind: input, shape index: {}]
  %s2 = inlined_call_operand.vmem [shape: f32[1,96], index: 2, kind: input, shape index: {}]
  %s3 = inlined_call_operand.hbm [shape: f32[96,128], index: 3, kind: input, shape index: {}]
  %s4 = inlined_call_operand.vmem [shape: f32[1,128], index: 4, kind: input, shape index: {}]
  %s5 = inlined_call_operand.hbm [shape: f32[128,128], index: 5, kind: output, shape index: {}]
  %s6 = sld [smem:[#allocation0]]
  $region42: #{tpu_custom_call.1} parent=0
    _
  %s8 = ssub.s32 1, %s6
  %s9 = scalar_select 0, %s8, %s6
  $region1: #{tpu_custom_call.1} parent=0
    #allocation2 [shape = 'u8[4096]{0}', space=vmem, size = 0x1000, scoped, tag = 'input window, operand 0, single buffered']
    #allocation3 [shape = 's32[1]{0}', space=sflag, size = 0x4, scoped, tag = 'scoped memory for tpu_custom_call.1']
    #allocation4 [shape = 's32[1]{0}', space=sflag, size = 0x4, scoped, tag = 'scoped memory for tpu_custom_call.1']
    #allocation5 [shape = 'u8[4096]{0}', space=vmem, size = 0x1000, scoped, tag = 'input window, operand 1, single buffered']
    #allocation6 [shape = 's32[1]{0}', space=sflag, size = 0x4, scoped, tag = 'scoped memory for tpu_custom_call.1']
    #allocation7 [shape = 'u8[49152]{0}', space=vmem, size = 0xc000, scoped, tag = 'input window, operand 3, single buffered']
    #allocation8 [shape = 'u8[65536]{0}', space=vmem, size = 0x10000, scoped, tag = 'output window, operand 0, single buffered']
    %10 = vsyncpa [#allocation3], 0
    %11 = vsyncpa [#allocation6], 0
    %12 = vsyncpa [#allocation4], 0
    // Predicated region
    $region2: #{tpu_custom_call.1} parent=1 // pred_check
      _
    $region3: #{tpu_custom_call.1} parent=1 // pred_check_branch
      %14 = sbr.rel (0) target = $region5
    $region4: #{tpu_custom_call.1} parent=1 // pred_region
      %s16 = ssub.s32 128, 128
      %17 = vsyncadd [#allocation3], %s16
      %s19 = sshll.u32 [#allocation2], 4
      %s20 = int_to_ptr.vmem [resolvable:$true] %s19
      %22 = dma.hbm_to_vmem [thread:$0]  %s0, 128, %s20, [#allocation3]
    $region5: #{tpu_custom_call.1} parent=1 // pred_fallthru
      _
    // Predicated region
    $region6: #{tpu_custom_call.1} parent=1 // pred_check
      _
    $region7: #{tpu_custom_call.1} parent=1 // pred_check_branch
      %24 = sbr.rel (0) target = $region9
    $region8: #{tpu_custom_call.1} parent=1 // pred_region
      %s26 = ssub.s32 128, 128
      %27 = vsyncadd [#allocation6], %s26
      %s29 = sshll.u32 [#allocation5], 4
      %s30 = int_to_ptr.vmem [resolvable:$true] %s29
      %32 = dma.hbm_to_vmem [thread:$0]  %s1, 128, %s30, [#allocation6]
    $region9: #{tpu_custom_call.1} parent=1 // pred_fallthru
      _
    // Predicated region
    $region10: #{tpu_custom_call.1} parent=1 // pred_check
      _
    $region11: #{tpu_custom_call.1} parent=1 // pred_check_branch
      %34 = sbr.rel (0) target = $region13
    $region12: #{tpu_custom_call.1} parent=1 // pred_region
      _
    $region13: #{tpu_custom_call.1} parent=1 // pred_fallthru
      _
    // Predicated region
    $region14: #{tpu_custom_call.1} parent=1 // pred_check
      _
    $region15: #{tpu_custom_call.1} parent=1 // pred_check_branch
      %36 = sbr.rel (0) target = $region17
    $region16: #{tpu_custom_call.1} parent=1 // pred_region
      %s38 = ssub.s32 1536, 1536
      %39 = vsyncadd [#allocation6], %s38
      %s40 = sshll.u32 [#allocation7], 4
      %s41 = int_to_ptr.vmem [resolvable:$true] %s40
      %46 = dma.hbm_to_vmem [thread:$0]  %s3, 1536, %s41, [#allocation6], 128, 128, 8
    $region17: #{tpu_custom_call.1} parent=1 // pred_fallthru
      _
    // Predicated region
    $region18: #{tpu_custom_call.1} parent=1 // pred_check
      _
    $region19: #{tpu_custom_call.1} parent=1 // pred_check_branch
      %48 = sbr.rel (0) target = $region21
    $region20: #{tpu_custom_call.1} parent=1 // pred_region
      _
    $region21: #{tpu_custom_call.1} parent=1 // pred_fallthru
      _
    // Predicated region
    $region22: #{tpu_custom_call.1} parent=1 // pred_check
      _
    $region23: #{tpu_custom_call.1} parent=1 // pred_check_branch
      %50 = sbr.rel (0) target = $region25
    $region24: #{tpu_custom_call.1} parent=1 // pred_region
      %51 = dma.done [#allocation3], 128
    $region25: #{tpu_custom_call.1} parent=1 // pred_fallthru
      _
    // Predicated region
    $region26: #{tpu_custom_call.1} parent=1 // pred_check
      _
    $region27: #{tpu_custom_call.1} parent=1 // pred_check_branch
      %53 = sbr.rel (0) target = $region29
    $region28: #{tpu_custom_call.1} parent=1 // pred_region
      %54 = dma.done [#allocation6], 128
    $region29: #{tpu_custom_call.1} parent=1 // pred_fallthru
      _
    // Predicated region
    $region30: #{tpu_custom_call.1} parent=1 // pred_check
      _
    $region31: #{tpu_custom_call.1} parent=1 // pred_check_branch
      %56 = sbr.rel (0) target = $region33
    $region32: #{tpu_custom_call.1} parent=1 // pred_region
      %57 = dma.done [#allocation6], 1536
    $region33: #{tpu_custom_call.1} parent=1 // pred_fallthru
      _
    %v58 = vld [vmem:[#allocation2] sm:$0xff]
    %59 = vxpose.xlu0.b32.start [1/16] %v58, 128
    %60 = vxpose.xlu0.b32.cont [2/16] 0.0, 128
    %61 = vxpose.xlu0.b32.cont [3/16] 0.0, 128
    %62 = vxpose.xlu0.b32.cont [4/16] 0.0, 128
    %63 = vxpose.xlu0.b32.cont [5/16] 0.0, 128
    %64 = vxpose.xlu0.b32.cont [6/16] 0.0, 128
    %65 = vxpose.xlu0.b32.cont [7/16] 0.0, 128
    %66 = vxpose.xlu0.b32.cont [8/16] 0.0, 128
    %67 = vxpose.xlu0.b32.cont [9/16] 0.0, 128
    %68 = vxpose.xlu0.b32.cont [10/16] 0.0, 128
    %69 = vxpose.xlu0.b32.cont [11/16] 0.0, 128
    %70 = vxpose.xlu0.b32.cont [12/16] 0.0, 128
    %71 = vxpose.xlu0.b32.cont [13/16] 0.0, 128
    %72 = vxpose.xlu0.b32.cont [14/16] 0.0, 128
    %73 = vxpose.xlu0.b32.cont [15/16] 0.0, 128
    %74 = vxpose.xlu0.b32.end [16/16] 0.0, 128
    %v75 = vpop.trf.xlu0
    %v76 = vpop.trf.xlu0
    %v77 = vpop.trf.xlu0
    %v78 = vpop.trf.xlu0
    %v79 = vpop.trf.xlu0
    %v80 = vpop.trf.xlu0
    %v81 = vpop.trf.xlu0
    %v82 = vpop.trf.xlu0
    %v83 = vpop.trf.xlu0
    %v84 = vpop.trf.xlu0
    %v85 = vpop.trf.xlu0
    %v86 = vpop.trf.xlu0
    %v87 = vpop.trf.xlu0
    %v88 = vpop.trf.xlu0
    %v89 = vpop.trf.xlu0
    %v90 = vpop.trf.xlu0
    %v91 = vld [vmem:[#allocation5] sm:$0xff]
    %vm92 = vcmask 64512
    %v94 = vsel %vm92, %v75, 0
    %v97 = vsel %vm92, %v76, 0
    %v100 = vsel %vm92, %v77, 0
    %v103 = vsel %vm92, %v78, 0
    %v106 = vsel %vm92, %v79, 0
    %v109 = vsel %vm92, %v80, 0
    %v112 = vsel %vm92, %v81, 0
    %v115 = vsel %vm92, %v82, 0
    %v118 = vsel %vm92, %v83, 0
    %v121 = vsel %vm92, %v84, 0
    %v124 = vsel %vm92, %v85, 0
    %v127 = vsel %vm92, %v86, 0
    %v130 = vsel %vm92, %v87, 0
    %v133 = vsel %vm92, %v88, 0
    %v136 = vsel %vm92, %v89, 0
    %v139 = vsel %vm92, %v90, 0
    %141 = vmatprep.subr.mxu0 0.0
    %v142 = vand.u32 %v91, 4294901760
    %143 = vmatpush1.msra.mxu0 %v142
    %144 = vmatprep.subr.mxu0 0.0
    %145 = vmatpush1.msra.mxu0 0.0
    %146 = vmatprep.subr.mxu0 0.0
    %147 = vmatpush1.msra.mxu0 0.0
    %148 = vmatprep.subr.mxu0 0.0
    %149 = vmatpush1.msra.mxu0 0.0
    %150 = vmatprep.subr.mxu0 0.0
    %151 = vmatpush1.msra.mxu0 0.0
    %152 = vmatprep.subr.mxu0 0.0
    %153 = vmatpush1.msra.mxu0 0.0
    %154 = vmatprep.subr.mxu0 0.0
    %155 = vmatpush1.msra.mxu0 0.0
    %156 = vmatprep.subr.mxu0 0.0
    %157 = vmatpush1.msra.mxu0 0.0
    %158 = vmatprep.subr.mxu0 0.0
    %159 = vmatpush1.msra.mxu0 0.0
    %160 = vmatprep.subr.mxu0 0.0
    %161 = vmatpush1.msra.mxu0 0.0
    %162 = vmatprep.subr.mxu0 0.0
    %163 = vmatpush1.msra.mxu0 0.0
    %164 = vmatprep.subr.mxu0 0.0
    %165 = vmatpush1.msra.mxu0 0.0
    %166 = vmatprep.subr.mxu0 0.0
    %167 = vmatpush1.msra.mxu0 0.0
    %168 = vmatprep.subr.mxu0 0.0
    %169 = vmatpush1.msra.mxu0 0.0
    %170 = vmatprep.subr.mxu0 0.0
    %171 = vmatpush1.msra.mxu0 0.0
    %172 = vmatprep.subr.mxu0 0.0
    %173 = vmatpush1.msra.mxu0 0.0
    %174 = vmatprep.subr.mxu0 0.0
    %175 = vmatpush1.msra.mxu0 0.0
    %176 = vmatprep.subr.mxu0 0.0
    %177 = vmatpush1.msra.mxu0 0.0
    %178 = vmatprep.subr.mxu0 0.0
    %179 = vmatpush1.msra.mxu0 0.0
    %180 = vmatprep.subr.mxu0 0.0
    %181 = vmatpush1.msra.mxu0 0.0
    %182 = vmatprep.subr.mxu0 0.0
    %183 = vmatpush1.msra.mxu0 0.0
    %184 = vmatprep.subr.mxu0 0.0
    %185 = vmatpush1.msra.mxu0 0.0
    %186 = vmatprep.subr.mxu0 0.0
    %187 = vmatpush1.msra.mxu0 0.0
    %188 = vmatprep.subr.mxu0 0.0
    %189 = vmatpush1.msra.mxu0 0.0
    %190 = vmatprep.subr.mxu0 0.0
    %191 = vmatpush1.msra.mxu0 0.0
    %192 = vmatprep.subr.mxu0 0.0
    %193 = vmatpush1.msra.mxu0 0.0
    %194 = vmatprep.subr.mxu0 0.0
    %195 = vmatpush1.msra.mxu0 0.0
    %196 = vmatprep.subr.mxu0 0.0
    %197 = vmatpush1.msra.mxu0 0.0
    %198 = vmatprep.subr.mxu0 0.0
    %199 = vmatpush1.msra.mxu0 0.0
    %200 = vmatprep.subr.mxu0 0.0
    %201 = vmatpush1.msra.mxu0 0.0
    %202 = vmatprep.subr.mxu0 0.0
    %203 = vmatpush1.msra.mxu0 0.0
    %204 = vmatprep.subr.mxu0 0.0
    %205 = vmatpush1.msra.mxu0 0.0
    %206 = vmatprep.mubr.f32.mxu0 0.0
    %v207 = vand.u32 %v94, 4294901760
    %v208 = vsub.f32 %v94, %v207
    %v209 = vand.u32 %v208, 4294901760
    %v210 = vsub.f32 %v208, %v209
    %v211 = vand.u32 %v210, 4294901760
    %212 = vmatmul.mubr.f32.gmra.mrb[0].mxu0 %v211
    %v213 = vpop.f32.mrb[0].mxu0
    %v214 = vadd.f32 0.0, %v213
    %v215 = vpop.f32.mrb[0].mxu0
    %216 = vmatprep.mubr.f32.mxu0 0.0
    %v217 = vand.u32 %v97, 4294901760
    %v218 = vsub.f32 %v97, %v217
    %v219 = vand.u32 %v218, 4294901760
    %v220 = vsub.f32 %v218, %v219
    %v221 = vand.u32 %v220, 4294901760
    %222 = vmatmul.mubr.f32.gmra.mrb[0].mxu0 %v221
    %v223 = vpop.f32.mrb[0].mxu0
    %v224 = vadd.f32 0.0, %v223
    %v225 = vpop.f32.mrb[0].mxu0
    %226 = vmatprep.mubr.f32.mxu0 0.0
    %v227 = vand.u32 %v100, 4294901760
    %v228 = vsub.f32 %v100, %v227
    %v229 = vand.u32 %v228, 4294901760
    %v230 = vsub.f32 %v228, %v229
    %v231 = vand.u32 %v230, 4294901760
    %232 = vmatmul.mubr.f32.gmra.mrb[0].mxu0 %v231
    %v233 = vpop.f32.mrb[0].mxu0
    %v234 = vadd.f32 0.0, %v233
    %v235 = vpop.f32.mrb[0].mxu0
    %236 = vmatprep.mubr.f32.mxu0 0.0
    %v237 = vand.u32 %v103, 4294901760
    %v238 = vsub.f32 %v103, %v237
    %v239 = vand.u32 %v238, 4294901760
    %v240 = vsub.f32 %v238, %v239
    %v241 = vand.u32 %v240, 4294901760
    %242 = vmatmul.mubr.f32.gmra.mrb[0].mxu0 %v241
    %v243 = vpop.f32.mrb[0].mxu0
    %v244 = vadd.f32 0.0, %v243
    %v245 = vpop.f32.mrb[0].mxu0
    %246 = vmatprep.mubr.f32.mxu0 0.0
    %v247 = vand.u32 %v106, 4294901760
    %v248 = vsub.f32 %v106, %v247
    %v249 = vand.u32 %v248, 4294901760
    %v250 = vsub.f32 %v248, %v249
    %v251 = vand.u32 %v250, 4294901760
    %252 = vmatmul.mubr.f32.gmra.mrb[0].mxu0 %v251
    %v253 = vpop.f32.mrb[0].mxu0
    %v254 = vadd.f32 0.0, %v253
    %v255 = vpop.f32.mrb[0].mxu0
    %256 = vmatprep.mubr.f32.mxu0 0.0
    %v257 = vand.u32 %v109, 4294901760
    %v258 = vsub.f32 %v109, %v257
    %v259 = vand.u32 %v258, 4294901760
    %v260 = vsub.f32 %v258, %v259
    %v261 = vand.u32 %v260, 4294901760
    %262 = vmatmul.mubr.f32.gmra.mrb[0].mxu0 %v261
    %v263 = vpop.f32.mrb[0].mxu0
    %v264 = vadd.f32 0.0, %v263
    %v265 = vpop.f32.mrb[0].mxu0
    %266 = vmatprep.mubr.f32.mxu0 0.0
    %v267 = vand.u32 %v112, 4294901760
    %v268 = vsub.f32 %v112, %v267
    %v269 = vand.u32 %v268, 4294901760
    %v270 = vsub.f32 %v268, %v269
    %v271 = vand.u32 %v270, 4294901760
    %272 = vmatmul.mubr.f32.gmra.mrb[0].mxu0 %v271
    %v273 = vpop.f32.mrb[0].mxu0
    %v274 = vadd.f32 0.0, %v273
    %v275 = vpop.f32.mrb[0].mxu0
    %276 = vmatprep.mubr.f32.mxu0 0.0
    %v277 = vand.u32 %v115, 4294901760
    %v278 = vsub.f32 %v115, %v277
    %v279 = vand.u32 %v278, 4294901760
    %v280 = vsub.f32 %v278, %v279
    %v281 = vand.u32 %v280, 4294901760
    %282 = vmatmul.mubr.f32.gmra.mrb[0].mxu0 %v281
    %v283 = vpop.f32.mrb[0].mxu0
    %v284 = vadd.f32 0.0, %v283
    %v285 = vpop.f32.mrb[0].mxu0
    %286 = vmatprep.mubr.f32.mxu0 0.0
    %v287 = vand.u32 %v118, 4294901760
    %v288 = vsub.f32 %v118, %v287
    %v289 = vand.u32 %v288, 4294901760
    %v290 = vsub.f32 %v288, %v289
    %v291 = vand.u32 %v290, 4294901760
    %292 = vmatmul.mubr.f32.gmra.mrb[0].mxu0 %v291
    %v293 = vpop.f32.mrb[0].mxu0
    %v294 = vadd.f32 0.0, %v293
    %v295 = vpop.f32.mrb[0].mxu0
    %296 = vmatprep.mubr.f32.mxu0 0.0
    %v297 = vand.u32 %v121, 4294901760
    %v298 = vsub.f32 %v121, %v297
    %v299 = vand.u32 %v298, 4294901760
    %v300 = vsub.f32 %v298, %v299
    %v301 = vand.u32 %v300, 4294901760
    %302 = vmatmul.mubr.f32.gmra.mrb[0].mxu0 %v301
    %v303 = vpop.f32.mrb[0].mxu0
    %v304 = vadd.f32 0.0, %v303
    %v305 = vpop.f32.mrb[0].mxu0
    %306 = vmatprep.mubr.f32.mxu0 0.0
    %v307 = vand.u32 %v124, 4294901760
    %v308 = vsub.f32 %v124, %v307
    %v309 = vand.u32 %v308, 4294901760
    %v310 = vsub.f32 %v308, %v309
    %v311 = vand.u32 %v310, 4294901760
    %312 = vmatmul.mubr.f32.gmra.mrb[0].mxu0 %v311
    %v313 = vpop.f32.mrb[0].mxu0
    %v314 = vadd.f32 0.0, %v313
    %v315 = vpop.f32.mrb[0].mxu0
    %316 = vmatprep.mubr.f32.mxu0 0.0
    %v317 = vand.u32 %v127, 4294901760
    %v318 = vsub.f32 %v127, %v317
    %v319 = vand.u32 %v318, 4294901760
    %v320 = vsub.f32 %v318, %v319
    %v321 = vand.u32 %v320, 4294901760
    %322 = vmatmul.mubr.f32.gmra.mrb[0].mxu0 %v321
    %v323 = vpop.f32.mrb[0].mxu0
    %v324 = vadd.f32 0.0, %v323
    %v325 = vpop.f32.mrb[0].mxu0
    %326 = vmatprep.mubr.f32.mxu0 0.0
    %v327 = vand.u32 %v130, 4294901760
    %v328 = vsub.f32 %v130, %v327
    %v329 = vand.u32 %v328, 4294901760
    %v330 = vsub.f32 %v328, %v329
    %v331 = vand.u32 %v330, 4294901760
    %332 = vmatmul.mubr.f32.gmra.mrb[0].mxu0 %v331
    %v333 = vpop.f32.mrb[0].mxu0
    %v334 = vadd.f32 0.0, %v333
    %v335 = vpop.f32.mrb[0].mxu0
    %336 = vmatprep.mubr.f32.mxu0 0.0
    %v337 = vand.u32 %v133, 4294901760
    %v338 = vsub.f32 %v133, %v337
    %v339 = vand.u32 %v338, 4294901760
    %v340 = vsub.f32 %v338, %v339
    %v341 = vand.u32 %v340, 4294901760
    %342 = vmatmul.mubr.f32.gmra.mrb[0].mxu0 %v341
    %v343 = vpop.f32.mrb[0].mxu0
    %v344 = vadd.f32 0.0, %v343
    %v345 = vpop.f32.mrb[0].mxu0
    %346 = vmatprep.mubr.f32.mxu0 0.0
    %v347 = vand.u32 %v136, 4294901760
    %v348 = vsub.f32 %v136, %v347
    %v349 = vand.u32 %v348, 4294901760
    %v350 = vsub.f32 %v348, %v349
    %v351 = vand.u32 %v350, 4294901760
    %352 = vmatmul.mubr.f32.gmra.mrb[0].mxu0 %v351
    %v353 = vpop.f32.mrb[0].mxu0
    %v354 = vadd.f32 0.0, %v353
    %v355 = vpop.f32.mrb[0].mxu0
    %356 = vmatprep.mubr.f32.mxu0 0.0
    %v357 = vand.u32 %v139, 4294901760
    %v358 = vsub.f32 %v139, %v357
    %v359 = vand.u32 %v358, 4294901760
    %v360 = vsub.f32 %v358, %v359
    %v361 = vand.u32 %v360, 4294901760
    %362 = vmatmul.mubr.f32.gmra.mrb[0].mxu0 %v361
    %v363 = vpop.f32.mrb[0].mxu0
    %v364 = vadd.f32 0.0, %v363
    %v365 = vpop.f32.mrb[0].mxu0
    %366 = vdwg.mxu0
    %367 = vmatprep.subr.mxu0 0.0
    %v368 = vand.u32 %v91, 4294901760
    %v369 = vsub.f32 %v91, %v368
    %v370 = vand.u32 %v369, 4294901760
    %v371 = vsub.f32 %v369, %v370
    %v372 = vand.u32 %v371, 4294901760
    %373 = vmatpush1.msra.mxu0 %v372
    %374 = vmatprep.subr.mxu0 0.0
    %375 = vmatpush1.msra.mxu0 0.0
    %376 = vmatprep.subr.mxu0 0.0
    %377 = vmatpush1.msra.mxu0 0.0
    %378 = vmatprep.subr.mxu0 0.0
    %379 = vmatpush1.msra.mxu0 0.0
    %380 = vmatprep.subr.mxu0 0.0
    %381 = vmatpush1.msra.mxu0 0.0
    %382 = vmatprep.subr.mxu0 0.0
    %383 = vmatpush1.msra.mxu0 0.0
    %384 = vmatprep.subr.mxu0 0.0
    %385 = vmatpush1.msra.mxu0 0.0
    %386 = vmatprep.subr.mxu0 0.0
    %387 = vmatpush1.msra.mxu0 0.0
    %388 = vmatprep.subr.mxu0 0.0
    %389 = vmatpush1.msra.mxu0 0.0
    %390 = vmatprep.subr.mxu0 0.0
    %391 = vmatpush1.msra.mxu0 0.0
    %392 = vmatprep.subr.mxu0 0.0
    %393 = vmatpush1.msra.mxu0 0.0
    %394 = vmatprep.subr.mxu0 0.0
    %395 = vmatpush1.msra.mxu0 0.0
    %396 = vmatprep.subr.mxu0 0.0
    %397 = vmatpush1.msra.mxu0 0.0
    %398 = vmatprep.subr.mxu0 0.0
    %399 = vmatpush1.msra.mxu0 0.0
    %400 = vmatprep.subr.mxu0 0.0
    %401 = vmatpush1.msra.mxu0 0.0
    %402 = vmatprep.subr.mxu0 0.0
    %403 = vmatpush1.msra.mxu0 0.0
    %404 = vmatprep.subr.mxu0 0.0
    %405 = vmatpush1.msra.mxu0 0.0
    %406 = vmatprep.subr.mxu0 0.0
    %407 = vmatpush1.msra.mxu0 0.0
    %408 = vmatprep.subr.mxu0 0.0
    %409 = vmatpush1.msra.mxu0 0.0
    %410 = vmatprep.subr.mxu0 0.0
    %411 = vmatpush1.msra.mxu0 0.0
    %412 = vmatprep.subr.mxu0 0.0
    %413 = vmatpush1.msra.mxu0 0.0
    %414 = vmatprep.subr.mxu0 0.0
    %415 = vmatpush1.msra.mxu0 0.0
    %416 = vmatprep.subr.mxu0 0.0
    %417 = vmatpush1.msra.mxu0 0.0
    %418 = vmatprep.subr.mxu0 0.0
    %419 = vmatpush1.msra.mxu0 0.0
    %420 = vmatprep.subr.mxu0 0.0
    %421 = vmatpush1.msra.mxu0 0.0
    %422 = vmatprep.subr.mxu0 0.0
    %423 = vmatpush1.msra.mxu0 0.0
    %424 = vmatprep.subr.mxu0 0.0
    %425 = vmatpush1.msra.mxu0 0.0
    %426 = vmatprep.subr.mxu0 0.0
    %427 = vmatpush1.msra.mxu0 0.0
    %428 = vmatprep.subr.mxu0 0.0
    %429 = vmatpush1.msra.mxu0 0.0
    %430 = vmatprep.subr.mxu0 0.0
    %431 = vmatpush1.msra.mxu0 0.0
    %432 = vmatprep.subr.mxu0 0.0
    %433 = vmatpush1.msra.mxu0 0.0
    %434 = vmatprep.subr.mxu0 0.0
    %435 = vmatpush1.msra.mxu0 0.0
    %436 = vmatprep.mubr.f32.mxu0 0.0
    %v437 = vand.u32 %v94, 4294901760
    %438 = vmatmul.mubr.f32.gmra.mrb[0].mxu0 %v437
    %v439 = vpop.f32.mrb[0].mxu0
    %v440 = vadd.f32 %v214, %v439
    %v441 = vpop.f32.mrb[0].mxu0
    %442 = vmatprep.mubr.f32.mxu0 0.0
    %v443 = vand.u32 %v97, 4294901760
    %444 = vmatmul.mubr.f32.gmra.mrb[0].mxu0 %v443
    %v445 = vpop.f32.mrb[0].mxu0
    %v446 = vadd.f32 %v224, %v445
    %v447 = vpop.f32.mrb[0].mxu0
    %448 = vmatprep.mubr.f32.mxu0 0.0
    %v449 = vand.u32 %v100, 4294901760
    %450 = vmatmul.mubr.f32.gmra.mrb[0].mxu0 %v449
    %v451 = vpop.f32.mrb[0].mxu0
    %v452 = vadd.f32 %v234, %v451
    %v453 = vpop.f32.mrb[0].mxu0
    %454 = vmatprep.mubr.f32.mxu0 0.0
    %v455 = vand.u32 %v103, 4294901760
    %456 = vmatmul.mubr.f32.gmra.mrb[0].mxu0 %v455
    %v457 = vpop.f32.mrb[0].mxu0
    %v458 = vadd.f32 %v244, %v457
    %v459 = vpop.f32.mrb[0].mxu0
    %460 = vmatprep.mubr.f32.mxu0 0.0
    %v461 = vand.u32 %v106, 4294901760
    %462 = vmatmul.mubr.f32.gmra.mrb[0].mxu0 %v461
    %v463 = vpop.f32.mrb[0].mxu0
    %v464 = vadd.f32 %v254, %v463
    %v465 = vpop.f32.mrb[0].mxu0
    %466 = vmatprep.mubr.f32.mxu0 0.0
    %v467 = vand.u32 %v109, 4294901760
    %468 = vmatmul.mubr.f32.gmra.mrb[0].mxu0 %v467
    %v469 = vpop.f32.mrb[0].mxu0
    %v470 = vadd.f32 %v264, %v469
    %v471 = vpop.f32.mrb[0].mxu0
    %472 = vmatprep.mubr.f32.mxu0 0.0
    %v473 = vand.u32 %v112, 4294901760
    %474 = vmatmul.mubr.f32.gmra.mrb[0].mxu0 %v473
    %v475 = vpop.f32.mrb[0].mxu0
    %v476 = vadd.f32 %v274, %v475
    %v477 = vpop.f32.mrb[0].mxu0
    %478 = vmatprep.mubr.f32.mxu0 0.0
    %v479 = vand.u32 %v115, 4294901760
    %480 = vmatmul.mubr.f32.gmra.mrb[0].mxu0 %v479
    %v481 = vpop.f32.mrb[0].mxu0
    %v482 = vadd.f32 %v284, %v481
    %v483 = vpop.f32.mrb[0].mxu0
    %484 = vmatprep.mubr.f32.mxu0 0.0
    %v485 = vand.u32 %v118, 4294901760
    %486 = vmatmul.mubr.f32.gmra.mrb[0].mxu0 %v485
    %v487 = vpop.f32.mrb[0].mxu0
    %v488 = vadd.f32 %v294, %v487
    %v489 = vpop.f32.mrb[0].mxu0
    %490 = vmatprep.mubr.f32.mxu0 0.0
    %v491 = vand.u32 %v121, 4294901760
    %492 = vmatmul.mubr.f32.gmra.mrb[0].mxu0 %v491
    %v493 = vpop.f32.mrb[0].mxu0
    %v494 = vadd.f32 %v304, %v493
    %v495 = vpop.f32.mrb[0].mxu0
    %496 = vmatprep.mubr.f32.mxu0 0.0
    %v497 = vand.u32 %v124, 4294901760
    %498 = vmatmul.mubr.f32.gmra.mrb[0].mxu0 %v497
    %v499 = vpop.f32.mrb[0].mxu0
    %v500 = vadd.f32 %v314, %v499
    %v501 = vpop.f32.mrb[0].mxu0
    %502 = vmatprep.mubr.f32.mxu0 0.0
    %v503 = vand.u32 %v127, 4294901760
    %504 = vmatmul.mubr.f32.gmra.mrb[0].mxu0 %v503
    %v505 = vpop.f32.mrb[0].mxu0
    %v506 = vadd.f32 %v324, %v505
    %v507 = vpop.f32.mrb[0].mxu0
    %508 = vmatprep.mubr.f32.mxu0 0.0
    %v509 = vand.u32 %v130, 4294901760
    %510 = vmatmul.mubr.f32.gmra.mrb[0].mxu0 %v509
    %v511 = vpop.f32.mrb[0].mxu0
    %v512 = vadd.f32 %v334, %v511
    %v513 = vpop.f32.mrb[0].mxu0
    %514 = vmatprep.mubr.f32.mxu0 0.0
    %v515 = vand.u32 %v133, 4294901760
    %516 = vmatmul.mubr.f32.gmra.mrb[0].mxu0 %v515
    %v517 = vpop.f32.mrb[0].mxu0
    %v518 = vadd.f32 %v344, %v517
    %v519 = vpop.f32.mrb[0].mxu0
    %520 = vmatprep.mubr.f32.mxu0 0.0
    %v521 = vand.u32 %v136, 4294901760
    %522 = vmatmul.mubr.f32.gmra.mrb[0].mxu0 %v521
    %v523 = vpop.f32.mrb[0].mxu0
    %v524 = vadd.f32 %v354, %v523
    %v525 = vpop.f32.mrb[0].mxu0
    %526 = vmatprep.mubr.f32.mxu0 0.0
    %v527 = vand.u32 %v139, 4294901760
    %528 = vmatmul.mubr.f32.gmra.mrb[0].mxu0 %v527
    %v529 = vpop.f32.mrb[0].mxu0
    %v530 = vadd.f32 %v364, %v529
    %v531 = vpop.f32.mrb[0].mxu0
    %532 = vdwg.mxu0
    %533 = vmatprep.subr.mxu0 0.0
    %v534 = vand.u32 %v91, 4294901760
    %v535 = vsub.f32 %v91, %v534
    %536 = vmatpush1.msra.mxu0 %v535
    %537 = vmatprep.subr.mxu0 0.0
    %538 = vmatpush1.msra.mxu0 0.0
    %539 = vmatprep.subr.mxu0 0.0
    %540 = vmatpush1.msra.mxu0 0.0
    %541 = vmatprep.subr.mxu0 0.0
    %542 = vmatpush1.msra.mxu0 0.0
    %543 = vmatprep.subr.mxu0 0.0
    %544 = vmatpush1.msra.mxu0 0.0
    %545 = vmatprep.subr.mxu0 0.0
    %546 = vmatpush1.msra.mxu0 0.0
    %547 = vmatprep.subr.mxu0 0.0
    %548 = vmatpush1.msra.mxu0 0.0
    %549 = vmatprep.subr.mxu0 0.0
    %550 = vmatpush1.msra.mxu0 0.0
    %551 = vmatprep.subr.mxu0 0.0
    %552 = vmatpush1.msra.mxu0 0.0
    %553 = vmatprep.subr.mxu0 0.0
    %554 = vmatpush1.msra.mxu0 0.0
    %555 = vmatprep.subr.mxu0 0.0
    %556 = vmatpush1.msra.mxu0 0.0
    %557 = vmatprep.subr.mxu0 0.0
    %558 = vmatpush1.msra.mxu0 0.0
    %559 = vmatprep.subr.mxu0 0.0
    %560 = vmatpush1.msra.mxu0 0.0
    %561 = vmatprep.subr.mxu0 0.0
    %562 = vmatpush1.msra.mxu0 0.0
    %563 = vmatprep.subr.mxu0 0.0
    %564 = vmatpush1.msra.mxu0 0.0
    %565 = vmatprep.subr.mxu0 0.0
    %566 = vmatpush1.msra.mxu0 0.0
    %567 = vmatprep.subr.mxu0 0.0
    %568 = vmatpush1.msra.mxu0 0.0
    %569 = vmatprep.subr.mxu0 0.0
    %570 = vmatpush1.msra.mxu0 0.0
    %571 = vmatprep.subr.mxu0 0.0
    %572 = vmatpush1.msra.mxu0 0.0
    %573 = vmatprep.subr.mxu0 0.0
    %574 = vmatpush1.msra.mxu0 0.0
    %575 = vmatprep.subr.mxu0 0.0
    %576 = vmatpush1.msra.mxu0 0.0
    %577 = vmatprep.subr.mxu0 0.0
    %578 = vmatpush1.msra.mxu0 0.0
    %579 = vmatprep.subr.mxu0 0.0
    %580 = vmatpush1.msra.mxu0 0.0
    %581 = vmatprep.subr.mxu0 0.0
    %582 = vmatpush1.msra.mxu0 0.0
    %583 = vmatprep.subr.mxu0 0.0
    %584 = vmatpush1.msra.mxu0 0.0
    %585 = vmatprep.subr.mxu0 0.0
    %586 = vmatpush1.msra.mxu0 0.0
    %587 = vmatprep.subr.mxu0 0.0
    %588 = vmatpush1.msra.mxu0 0.0
    %589 = vmatprep.subr.mxu0 0.0
    %590 = vmatpush1.msra.mxu0 0.0
    %591 = vmatprep.subr.mxu0 0.0
    %592 = vmatpush1.msra.mxu0 0.0
    %593 = vmatprep.subr.mxu0 0.0
    %594 = vmatpush1.msra.mxu0 0.0
    %595 = vmatprep.subr.mxu0 0.0
    %596 = vmatpush1.msra.mxu0 0.0
    %597 = vmatprep.subr.mxu0 0.0
    %598 = vmatpush1.msra.mxu0 0.0
    %599 = vmatprep.mubr.f32.mxu0 0.0
    %v600 = vand.u32 %v94, 4294901760
    %v601 = vsub.f32 %v94, %v600
    %602 = vmatmul.mubr.f32.gmra.mrb[0].mxu0 %v601
    %v603 = vpop.f32.mrb[0].mxu0
    %v604 = vadd.f32 %v440, %v603
    %v605 = vpop.f32.mrb[0].mxu0
    %606 = vmatprep.mubr.f32.mxu0 0.0
    %v607 = vand.u32 %v97, 4294901760
    %v608 = vsub.f32 %v97, %v607
    %609 = vmatmul.mubr.f32.gmra.mrb[0].mxu0 %v608
    %v610 = vpop.f32.mrb[0].mxu0
    %v611 = vadd.f32 %v446, %v610
    %v612 = vpop.f32.mrb[0].mxu0
    %613 = vmatprep.mubr.f32.mxu0 0.0
    %v614 = vand.u32 %v100, 4294901760
    %v615 = vsub.f32 %v100, %v614
    %616 = vmatmul.mubr.f32.gmra.mrb[0].mxu0 %v615
    %v617 = vpop.f32.mrb[0].mxu0
    %v618 = vadd.f32 %v452, %v617
    %v619 = vpop.f32.mrb[0].mxu0
    %620 = vmatprep.mubr.f32.mxu0 0.0
    %v621 = vand.u32 %v103, 4294901760
    %v622 = vsub.f32 %v103, %v621
    %623 = vmatmul.mubr.f32.gmra.mrb[0].mxu0 %v622
    %v624 = vpop.f32.mrb[0].mxu0
    %v625 = vadd.f32 %v458, %v624
    %v626 = vpop.f32.mrb[0].mxu0
    %627 = vmatprep.mubr.f32.mxu0 0.0
    %v628 = vand.u32 %v106, 4294901760
    %v629 = vsub.f32 %v106, %v628
    %630 = vmatmul.mubr.f32.gmra.mrb[0].mxu0 %v629
    %v631 = vpop.f32.mrb[0].mxu0
    %v632 = vadd.f32 %v464, %v631
    %v633 = vpop.f32.mrb[0].mxu0
    %634 = vmatprep.mubr.f32.mxu0 0.0
    %v635 = vand.u32 %v109, 4294901760
    %v636 = vsub.f32 %v109, %v635
    %637 = vmatmul.mubr.f32.gmra.mrb[0].mxu0 %v636
    %v638 = vpop.f32.mrb[0].mxu0
    %v639 = vadd.f32 %v470, %v638
    %v640 = vpop.f32.mrb[0].mxu0
    %641 = vmatprep.mubr.f32.mxu0 0.0
    %v642 = vand.u32 %v112, 4294901760
    %v643 = vsub.f32 %v112, %v642
    %644 = vmatmul.mubr.f32.gmra.mrb[0].mxu0 %v643
    %v645 = vpop.f32.mrb[0].mxu0
    %v646 = vadd.f32 %v476, %v645
    %v647 = vpop.f32.mrb[0].mxu0
    %648 = vmatprep.mubr.f32.mxu0 0.0
    %v649 = vand.u32 %v115, 4294901760
    %v650 = vsub.f32 %v115, %v649
    %651 = vmatmul.mubr.f32.gmra.mrb[0].mxu0 %v650
    %v652 = vpop.f32.mrb[0].mxu0
    %v653 = vadd.f32 %v482, %v652
    %v654 = vpop.f32.mrb[0].mxu0
    %655 = vmatprep.mubr.f32.mxu0 0.0
    %v656 = vand.u32 %v118, 4294901760
    %v657 = vsub.f32 %v118, %v656
    %658 = vmatmul.mubr.f32.gmra.mrb[0].mxu0 %v657
    %v659 = vpop.f32.mrb[0].mxu0
    %v660 = vadd.f32 %v488, %v659
    %v661 = vpop.f32.mrb[0].mxu0
    %662 = vmatprep.mubr.f32.mxu0 0.0
    %v663 = vand.u32 %v121, 4294901760
    %v664 = vsub.f32 %v121, %v663
    %665 = vmatmul.mubr.f32.gmra.mrb[0].mxu0 %v664
    %v666 = vpop.f32.mrb[0].mxu0
    %v667 = vadd.f32 %v494, %v666
    %v668 = vpop.f32.mrb[0].mxu0
    %669 = vmatprep.mubr.f32.mxu0 0.0
    %v670 = vand.u32 %v124, 4294901760
    %v671 = vsub.f32 %v124, %v670
    %672 = vmatmul.mubr.f32.gmra.mrb[0].mxu0 %v671
    %v673 = vpop.f32.mrb[0].mxu0
    %v674 = vadd.f32 %v500, %v673
    %v675 = vpop.f32.mrb[0].mxu0
    %676 = vmatprep.mubr.f32.mxu0 0.0
    %v677 = vand.u32 %v127, 4294901760
    %v678 = vsub.f32 %v127, %v677
    %679 = vmatmul.mubr.f32.gmra.mrb[0].mxu0 %v678
    %v680 = vpop.f32.mrb[0].mxu0
    %v681 = vadd.f32 %v506, %v680
    %v682 = vpop.f32.mrb[0].mxu0
    %683 = vmatprep.mubr.f32.mxu0 0.0
    %v684 = vand.u32 %v130, 4294901760
    %v685 = vsub.f32 %v130, %v684
    %686 = vmatmul.mubr.f32.gmra.mrb[0].mxu0 %v685
    %v687 = vpop.f32.mrb[0].mxu0
    %v688 = vadd.f32 %v512, %v687
    %v689 = vpop.f32.mrb[0].mxu0
    %690 = vmatprep.mubr.f32.mxu0 0.0
    %v691 = vand.u32 %v133, 4294901760
    %v692 = vsub.f32 %v133, %v691
    %693 = vmatmul.mubr.f32.gmra.mrb[0].mxu0 %v692
    %v694 = vpop.f32.mrb[0].mxu0
    %v695 = vadd.f32 %v518, %v694
    %v696 = vpop.f32.mrb[0].mxu0
    %697 = vmatprep.mubr.f32.mxu0 0.0
    %v698 = vand.u32 %v136, 4294901760
    %v699 = vsub.f32 %v136, %v698
    %700 = vmatmul.mubr.f32.gmra.mrb[0].mxu0 %v699
    %v701 = vpop.f32.mrb[0].mxu0
    %v702 = vadd.f32 %v524, %v701
    %v703 = vpop.f32.mrb[0].mxu0
    %704 = vmatprep.mubr.f32.mxu0 0.0
    %v705 = vand.u32 %v139, 4294901760
    %v706 = vsub.f32 %v139, %v705
    %707 = vmatmul.mubr.f32.gmra.mrb[0].mxu0 %v706
    %v708 = vpop.f32.mrb[0].mxu0
    %v709 = vadd.f32 %v530, %v708
    %v710 = vpop.f32.mrb[0].mxu0
    %711 = vdwg.mxu0
    %712 = vmatprep.subr.mxu0 0.0
    %v713 = vand.u32 %v91, 4294901760
    %714 = vmatpush1.msra.mxu0 %v713
    %715 = vmatprep.subr.mxu0 0.0
    %716 = vmatpush1.msra.mxu0 0.0
    %717 = vmatprep.subr.mxu0 0.0
    %718 = vmatpush1.msra.mxu0 0.0
    %719 = vmatprep.subr.mxu0 0.0
    %720 = vmatpush1.msra.mxu0 0.0
    %721 = vmatprep.subr.mxu0 0.0
    %722 = vmatpush1.msra.mxu0 0.0
    %723 = vmatprep.subr.mxu0 0.0
    %724 = vmatpush1.msra.mxu0 0.0
    %725 = vmatprep.subr.mxu0 0.0
    %726 = vmatpush1.msra.mxu0 0.0
    %727 = vmatprep.subr.mxu0 0.0
    %728 = vmatpush1.msra.mxu0 0.0
    %729 = vmatprep.subr.mxu0 0.0
    %730 = vmatpush1.msra.mxu0 0.0
    %731 = vmatprep.subr.mxu0 0.0
    %732 = vmatpush1.msra.mxu0 0.0
    %733 = vmatprep.subr.mxu0 0.0
    %734 = vmatpush1.msra.mxu0 0.0
    %735 = vmatprep.subr.mxu0 0.0
    %736 = vmatpush1.msra.mxu0 0.0
    %737 = vmatprep.subr.mxu0 0.0
    %738 = vmatpush1.msra.mxu0 0.0
    %739 = vmatprep.subr.mxu0 0.0
    %740 = vmatpush1.msra.mxu0 0.0
    %741 = vmatprep.subr.mxu0 0.0
    %742 = vmatpush1.msra.mxu0 0.0
    %743 = vmatprep.subr.mxu0 0.0
    %744 = vmatpush1.msra.mxu0 0.0
    %745 = vmatprep.subr.mxu0 0.0
    %746 = vmatpush1.msra.mxu0 0.0
    %747 = vmatprep.subr.mxu0 0.0
    %748 = vmatpush1.msra.mxu0 0.0
    %749 = vmatprep.subr.mxu0 0.0
    %750 = vmatpush1.msra.mxu0 0.0
    %751 = vmatprep.subr.mxu0 0.0
    %752 = vmatpush1.msra.mxu0 0.0
    %753 = vmatprep.subr.mxu0 0.0
    %754 = vmatpush1.msra.mxu0 0.0
    %755 = vmatprep.subr.mxu0 0.0
    %756 = vmatpush1.msra.mxu0 0.0
    %757 = vmatprep.subr.mxu0 0.0
    %758 = vmatpush1.msra.mxu0 0.0
    %759 = vmatprep.subr.mxu0 0.0
    %760 = vmatpush1.msra.mxu0 0.0
    %761 = vmatprep.subr.mxu0 0.0
    %762 = vmatpush1.msra.mxu0 0.0
    %763 = vmatprep.subr.mxu0 0.0
    %764 = vmatpush1.msra.mxu0 0.0
    %765 = vmatprep.subr.mxu0 0.0
    %766 = vmatpush1.msra.mxu0 0.0
    %767 = vmatprep.subr.mxu0 0.0
    %768 = vmatpush1.msra.mxu0 0.0
    %769 = vmatprep.subr.mxu0 0.0
    %770 = vmatpush1.msra.mxu0 0.0
    %771 = vmatprep.subr.mxu0 0.0
    %772 = vmatpush1.msra.mxu0 0.0
    %773 = vmatprep.subr.mxu0 0.0
    %774 = vmatpush1.msra.mxu0 0.0
    %775 = vmatprep.subr.mxu0 0.0
    %776 = vmatpush1.msra.mxu0 0.0
    %777 = vmatprep.mubr.f32.mxu0 0.0
    %v778 = vand.u32 %v94, 4294901760
    %v779 = vsub.f32 %v94, %v778
    %v780 = vand.u32 %v779, 4294901760
    %781 = vmatmul.mubr.f32.gmra.mrb[0].mxu0 %v780
    %v782 = vpop.f32.mrb[0].mxu0
    %v783 = vadd.f32 %v604, %v782
    %v784 = vpop.f32.mrb[0].mxu0
    %785 = vmatprep.mubr.f32.mxu0 0.0
    %v786 = vand.u32 %v97, 4294901760
    %v787 = vsub.f32 %v97, %v786
    %v788 = vand.u32 %v787, 4294901760
    %789 = vmatmul.mubr.f32.gmra.mrb[0].mxu0 %v788
    %v790 = vpop.f32.mrb[0].mxu0
    %v791 = vadd.f32 %v611, %v790
    %v792 = vpop.f32.mrb[0].mxu0
    %793 = vmatprep.mubr.f32.mxu0 0.0
    %v794 = vand.u32 %v100, 4294901760
    %v795 = vsub.f32 %v100, %v794
    %v796 = vand.u32 %v795, 4294901760
    %797 = vmatmul.mubr.f32.gmra.mrb[0].mxu0 %v796
    %v798 = vpop.f32.mrb[0].mxu0
    %v799 = vadd.f32 %v618, %v798
    %v800 = vpop.f32.mrb[0].mxu0
    %801 = vmatprep.mubr.f32.mxu0 0.0
    %v802 = vand.u32 %v103, 4294901760
    %v803 = vsub.f32 %v103, %v802
    %v804 = vand.u32 %v803, 4294901760
    %805 = vmatmul.mubr.f32.gmra.mrb[0].mxu0 %v804
    %v806 = vpop.f32.mrb[0].mxu0
    %v807 = vadd.f32 %v625, %v806
    %v808 = vpop.f32.mrb[0].mxu0
    %809 = vmatprep.mubr.f32.mxu0 0.0
    %v810 = vand.u32 %v106, 4294901760
    %v811 = vsub.f32 %v106, %v810
    %v812 = vand.u32 %v811, 4294901760
    %813 = vmatmul.mubr.f32.gmra.mrb[0].mxu0 %v812
    %v814 = vpop.f32.mrb[0].mxu0
    %v815 = vadd.f32 %v632, %v814
    %v816 = vpop.f32.mrb[0].mxu0
    %817 = vmatprep.mubr.f32.mxu0 0.0
    %v818 = vand.u32 %v109, 4294901760
    %v819 = vsub.f32 %v109, %v818
    %v820 = vand.u32 %v819, 4294901760
    %821 = vmatmul.mubr.f32.gmra.mrb[0].mxu0 %v820
    %v822 = vpop.f32.mrb[0].mxu0
    %v823 = vadd.f32 %v639, %v822
    %v824 = vpop.f32.mrb[0].mxu0
    %825 = vmatprep.mubr.f32.mxu0 0.0
    %v826 = vand.u32 %v112, 4294901760
    %v827 = vsub.f32 %v112, %v826
    %v828 = vand.u32 %v827, 4294901760
    %829 = vmatmul.mubr.f32.gmra.mrb[0].mxu0 %v828
    %v830 = vpop.f32.mrb[0].mxu0
    %v831 = vadd.f32 %v646, %v830
    %v832 = vpop.f32.mrb[0].mxu0
    %833 = vmatprep.mubr.f32.mxu0 0.0
    %v834 = vand.u32 %v115, 4294901760
    %v835 = vsub.f32 %v115, %v834
    %v836 = vand.u32 %v835, 4294901760
    %837 = vmatmul.mubr.f32.gmra.mrb[0].mxu0 %v836
    %v838 = vpop.f32.mrb[0].mxu0
    %v839 = vadd.f32 %v653, %v838
    %v840 = vpop.f32.mrb[0].mxu0
    %841 = vmatprep.mubr.f32.mxu0 0.0
    %v842 = vand.u32 %v118, 4294901760
    %v843 = vsub.f32 %v118, %v842
    %v844 = vand.u32 %v843, 4294901760
    %845 = vmatmul.mubr.f32.gmra.mrb[0].mxu0 %v844
    %v846 = vpop.f32.mrb[0].mxu0
    %v847 = vadd.f32 %v660, %v846
    %v848 = vpop.f32.mrb[0].mxu0
    %849 = vmatprep.mubr.f32.mxu0 0.0
    %v850 = vand.u32 %v121, 4294901760
    %v851 = vsub.f32 %v121, %v850
    %v852 = vand.u32 %v851, 4294901760
    %853 = vmatmul.mubr.f32.gmra.mrb[0].mxu0 %v852
    %v854 = vpop.f32.mrb[0].mxu0
    %v855 = vadd.f32 %v667, %v854
    %v856 = vpop.f32.mrb[0].mxu0
    %857 = vmatprep.mubr.f32.mxu0 0.0
    %v858 = vand.u32 %v124, 4294901760
    %v859 = vsub.f32 %v124, %v858
    %v860 = vand.u32 %v859, 4294901760
    %861 = vmatmul.mubr.f32.gmra.mrb[0].mxu0 %v860
    %v862 = vpop.f32.mrb[0].mxu0
    %v863 = vadd.f32 %v674, %v862
    %v864 = vpop.f32.mrb[0].mxu0
    %865 = vmatprep.mubr.f32.mxu0 0.0
    %v866 = vand.u32 %v127, 4294901760
    %v867 = vsub.f32 %v127, %v866
    %v868 = vand.u32 %v867, 4294901760
    %869 = vmatmul.mubr.f32.gmra.mrb[0].mxu0 %v868
    %v870 = vpop.f32.mrb[0].mxu0
    %v871 = vadd.f32 %v681, %v870
    %v872 = vpop.f32.mrb[0].mxu0
    %873 = vmatprep.mubr.f32.mxu0 0.0
    %v874 = vand.u32 %v130, 4294901760
    %v875 = vsub.f32 %v130, %v874
    %v876 = vand.u32 %v875, 4294901760
    %877 = vmatmul.mubr.f32.gmra.mrb[0].mxu0 %v876
    %v878 = vpop.f32.mrb[0].mxu0
    %v879 = vadd.f32 %v688, %v878
    %v880 = vpop.f32.mrb[0].mxu0
    %881 = vmatprep.mubr.f32.mxu0 0.0
    %v882 = vand.u32 %v133, 4294901760
    %v883 = vsub.f32 %v133, %v882
    %v884 = vand.u32 %v883, 4294901760
    %885 = vmatmul.mubr.f32.gmra.mrb[0].mxu0 %v884
    %v886 = vpop.f32.mrb[0].mxu0
    %v887 = vadd.f32 %v695, %v886
    %v888 = vpop.f32.mrb[0].mxu0
    %889 = vmatprep.mubr.f32.mxu0 0.0
    %v890 = vand.u32 %v136, 4294901760
    %v891 = vsub.f32 %v136, %v890
    %v892 = vand.u32 %v891, 4294901760
    %893 = vmatmul.mubr.f32.gmra.mrb[0].mxu0 %v892
    %v894 = vpop.f32.mrb[0].mxu0
    %v895 = vadd.f32 %v702, %v894
    %v896 = vpop.f32.mrb[0].mxu0
    %897 = vmatprep.mubr.f32.mxu0 0.0
    %v898 = vand.u32 %v139, 4294901760
    %v899 = vsub.f32 %v139, %v898
    %v900 = vand.u32 %v899, 4294901760
    %901 = vmatmul.mubr.f32.gmra.mrb[0].mxu0 %v900
    %v902 = vpop.f32.mrb[0].mxu0
    %v903 = vadd.f32 %v709, %v902
    %v904 = vpop.f32.mrb[0].mxu0
    %905 = vdwg.mxu0
    %906 = vmatprep.subr.mxu0 0.0
    %v907 = vand.u32 %v91, 4294901760
    %v908 = vsub.f32 %v91, %v907
    %v909 = vand.u32 %v908, 4294901760
    %910 = vmatpush1.msra.mxu0 %v909
    %911 = vmatprep.subr.mxu0 0.0
    %912 = vmatpush1.msra.mxu0 0.0
    %913 = vmatprep.subr.mxu0 0.0
    %914 = vmatpush1.msra.mxu0 0.0
    %915 = vmatprep.subr.mxu0 0.0
    %916 = vmatpush1.msra.mxu0 0.0
    %917 = vmatprep.subr.mxu0 0.0
    %918 = vmatpush1.msra.mxu0 0.0
    %919 = vmatprep.subr.mxu0 0.0
    %920 = vmatpush1.msra.mxu0 0.0
    %921 = vmatprep.subr.mxu0 0.0
    %922 = vmatpush1.msra.mxu0 0.0
    %923 = vmatprep.subr.mxu0 0.0
    %924 = vmatpush1.msra.mxu0 0.0
    %925 = vmatprep.subr.mxu0 0.0
    %926 = vmatpush1.msra.mxu0 0.0
    %927 = vmatprep.subr.mxu0 0.0
    %928 = vmatpush1.msra.mxu0 0.0
    %929 = vmatprep.subr.mxu0 0.0
    %930 = vmatpush1.msra.mxu0 0.0
    %931 = vmatprep.subr.mxu0 0.0
    %932 = vmatpush1.msra.mxu0 0.0
    %933 = vmatprep.subr.mxu0 0.0
    %934 = vmatpush1.msra.mxu0 0.0
    %935 = vmatprep.subr.mxu0 0.0
    %936 = vmatpush1.msra.mxu0 0.0
    %937 = vmatprep.subr.mxu0 0.0
    %938 = vmatpush1.msra.mxu0 0.0
    %939 = vmatprep.subr.mxu0 0.0
    %940 = vmatpush1.msra.mxu0 0.0
    %941 = vmatprep.subr.mxu0 0.0
    %942 = vmatpush1.msra.mxu0 0.0
    %943 = vmatprep.subr.mxu0 0.0
    %944 = vmatpush1.msra.mxu0 0.0
    %945 = vmatprep.subr.mxu0 0.0
    %946 = vmatpush1.msra.mxu0 0.0
    %947 = vmatprep.subr.mxu0 0.0
    %948 = vmatpush1.msra.mxu0 0.0
    %949 = vmatprep.subr.mxu0 0.0
    %950 = vmatpush1.msra.mxu0 0.0
    %951 = vmatprep.subr.mxu0 0.0
    %952 = vmatpush1.msra.mxu0 0.0
    %953 = vmatprep.subr.mxu0 0.0
    %954 = vmatpush1.msra.mxu0 0.0
    %955 = vmatprep.subr.mxu0 0.0
    %956 = vmatpush1.msra.mxu0 0.0
    %957 = vmatprep.subr.mxu0 0.0
    %958 = vmatpush1.msra.mxu0 0.0
    %959 = vmatprep.subr.mxu0 0.0
    %960 = vmatpush1.msra.mxu0 0.0
    %961 = vmatprep.subr.mxu0 0.0
    %962 = vmatpush1.msra.mxu0 0.0
    %963 = vmatprep.subr.mxu0 0.0
    %964 = vmatpush1.msra.mxu0 0.0
    %965 = vmatprep.subr.mxu0 0.0
    %966 = vmatpush1.msra.mxu0 0.0
    %967 = vmatprep.subr.mxu0 0.0
    %968 = vmatpush1.msra.mxu0 0.0
    %969 = vmatprep.subr.mxu0 0.0
    %970 = vmatpush1.msra.mxu0 0.0
    %971 = vmatprep.subr.mxu0 0.0
    %972 = vmatpush1.msra.mxu0 0.0
    %973 = vmatprep.mubr.f32.mxu0 0.0
    %v974 = vand.u32 %v94, 4294901760
    %975 = vmatmul.mubr.f32.gmra.mrb[0].mxu0 %v974
    %v976 = vpop.f32.mrb[0].mxu0
    %v977 = vadd.f32 %v783, %v976
    %v978 = vpop.f32.mrb[0].mxu0
    %979 = vmatprep.mubr.f32.mxu0 0.0
    %v980 = vand.u32 %v97, 4294901760
    %981 = vmatmul.mubr.f32.gmra.mrb[0].mxu0 %v980
    %v982 = vpop.f32.mrb[0].mxu0
    %v983 = vadd.f32 %v791, %v982
    %v984 = vpop.f32.mrb[0].mxu0
    %985 = vmatprep.mubr.f32.mxu0 0.0
    %v986 = vand.u32 %v100, 4294901760
    %987 = vmatmul.mubr.f32.gmra.mrb[0].mxu0 %v986
    %v988 = vpop.f32.mrb[0].mxu0
    %v989 = vadd.f32 %v799, %v988
    %v990 = vpop.f32.mrb[0].mxu0
    %991 = vmatprep.mubr.f32.mxu0 0.0
    %v992 = vand.u32 %v103, 4294901760
    %993 = vmatmul.mubr.f32.gmra.mrb[0].mxu0 %v992
    %v994 = vpop.f32.mrb[0].mxu0
    %v995 = vadd.f32 %v807, %v994
    %v996 = vpop.f32.mrb[0].mxu0
    %997 = vmatprep.mubr.f32.mxu0 0.0
    %v998 = vand.u32 %v106, 4294901760
    %999 = vmatmul.mubr.f32.gmra.mrb[0].mxu0 %v998
    %v1000 = vpop.f32.mrb[0].mxu0
    %v1001 = vadd.f32 %v815, %v1000
    %v1002 = vpop.f32.mrb[0].mxu0
    %1003 = vmatprep.mubr.f32.mxu0 0.0
    %v1004 = vand.u32 %v109, 4294901760
    %1005 = vmatmul.mubr.f32.gmra.mrb[0].mxu0 %v1004
    %v1006 = vpop.f32.mrb[0].mxu0
    %v1007 = vadd.f32 %v823, %v1006
    %v1008 = vpop.f32.mrb[0].mxu0
    %1009 = vmatprep.mubr.f32.mxu0 0.0
    %v1010 = vand.u32 %v112, 4294901760
    %1011 = vmatmul.mubr.f32.gmra.mrb[0].mxu0 %v1010
    %v1012 = vpop.f32.mrb[0].mxu0
    %v1013 = vadd.f32 %v831, %v1012
    %v1014 = vpop.f32.mrb[0].mxu0
    %1015 = vmatprep.mubr.f32.mxu0 0.0
    %v1016 = vand.u32 %v115, 4294901760
    %1017 = vmatmul.mubr.f32.gmra.mrb[0].mxu0 %v1016
    %v1018 = vpop.f32.mrb[0].mxu0
    %v1019 = vadd.f32 %v839, %v1018
    %v1020 = vpop.f32.mrb[0].mxu0
    %1021 = vmatprep.mubr.f32.mxu0 0.0
    %v1022 = vand.u32 %v118, 4294901760
    %1023 = vmatmul.mubr.f32.gmra.mrb[0].mxu0 %v1022
    %v1024 = vpop.f32.mrb[0].mxu0
    %v1025 = vadd.f32 %v847, %v1024
    %v1026 = vpop.f32.mrb[0].mxu0
    %1027 = vmatprep.mubr.f32.mxu0 0.0
    %v1028 = vand.u32 %v121, 4294901760
    %1029 = vmatmul.mubr.f32.gmra.mrb[0].mxu0 %v1028
    %v1030 = vpop.f32.mrb[0].mxu0
    %v1031 = vadd.f32 %v855, %v1030
    %v1032 = vpop.f32.mrb[0].mxu0
    %1033 = vmatprep.mubr.f32.mxu0 0.0
    %v1034 = vand.u32 %v124, 4294901760
    %1035 = vmatmul.mubr.f32.gmra.mrb[0].mxu0 %v1034
    %v1036 = vpop.f32.mrb[0].mxu0
    %v1037 = vadd.f32 %v863, %v1036
    %v1038 = vpop.f32.mrb[0].mxu0
    %1039 = vmatprep.mubr.f32.mxu0 0.0
    %v1040 = vand.u32 %v127, 4294901760
    %1041 = vmatmul.mubr.f32.gmra.mrb[0].mxu0 %v1040
    %v1042 = vpop.f32.mrb[0].mxu0
    %v1043 = vadd.f32 %v871, %v1042
    %v1044 = vpop.f32.mrb[0].mxu0
    %1045 = vmatprep.mubr.f32.mxu0 0.0
    %v1046 = vand.u32 %v130, 4294901760
    %1047 = vmatmul.mubr.f32.gmra.mrb[0].mxu0 %v1046
    %v1048 = vpop.f32.mrb[0].mxu0
    %v1049 = vadd.f32 %v879, %v1048
    %v1050 = vpop.f32.mrb[0].mxu0
    %1051 = vmatprep.mubr.f32.mxu0 0.0
    %v1052 = vand.u32 %v133, 4294901760
    %1053 = vmatmul.mubr.f32.gmra.mrb[0].mxu0 %v1052
    %v1054 = vpop.f32.mrb[0].mxu0
    %v1055 = vadd.f32 %v887, %v1054
    %v1056 = vpop.f32.mrb[0].mxu0
    %1057 = vmatprep.mubr.f32.mxu0 0.0
    %v1058 = vand.u32 %v136, 4294901760
    %1059 = vmatmul.mubr.f32.gmra.mrb[0].mxu0 %v1058
    %v1060 = vpop.f32.mrb[0].mxu0
    %v1061 = vadd.f32 %v895, %v1060
    %v1062 = vpop.f32.mrb[0].mxu0
    %1063 = vmatprep.mubr.f32.mxu0 0.0
    %v1064 = vand.u32 %v139, 4294901760
    %1065 = vmatmul.mubr.f32.gmra.mrb[0].mxu0 %v1064
    %v1066 = vpop.f32.mrb[0].mxu0
    %v1067 = vadd.f32 %v903, %v1066
    %v1068 = vpop.f32.mrb[0].mxu0
    %1069 = vdwg.mxu0
    %1070 = vmatprep.subr.mxu0 0.0
    %v1071 = vand.u32 %v91, 4294901760
    %1072 = vmatpush1.msra.mxu0 %v1071
    %1073 = vmatprep.subr.mxu0 0.0
    %1074 = vmatpush1.msra.mxu0 0.0
    %1075 = vmatprep.subr.mxu0 0.0
    %1076 = vmatpush1.msra.mxu0 0.0
    %1077 = vmatprep.subr.mxu0 0.0
    %1078 = vmatpush1.msra.mxu0 0.0
    %1079 = vmatprep.subr.mxu0 0.0
    %1080 = vmatpush1.msra.mxu0 0.0
    %1081 = vmatprep.subr.mxu0 0.0
    %1082 = vmatpush1.msra.mxu0 0.0
    %1083 = vmatprep.subr.mxu0 0.0
    %1084 = vmatpush1.msra.mxu0 0.0
    %1085 = vmatprep.subr.mxu0 0.0
    %1086 = vmatpush1.msra.mxu0 0.0
    %1087 = vmatprep.subr.mxu0 0.0
    %1088 = vmatpush1.msra.mxu0 0.0
    %1089 = vmatprep.subr.mxu0 0.0
    %1090 = vmatpush1.msra.mxu0 0.0
    %1091 = vmatprep.subr.mxu0 0.0
    %1092 = vmatpush1.msra.mxu0 0.0
    %1093 = vmatprep.subr.mxu0 0.0
    %1094 = vmatpush1.msra.mxu0 0.0
    %1095 = vmatprep.subr.mxu0 0.0
    %1096 = vmatpush1.msra.mxu0 0.0
    %1097 = vmatprep.subr.mxu0 0.0
    %1098 = vmatpush1.msra.mxu0 0.0
    %1099 = vmatprep.subr.mxu0 0.0
    %1100 = vmatpush1.msra.mxu0 0.0
    %1101 = vmatprep.subr.mxu0 0.0
    %1102 = vmatpush1.msra.mxu0 0.0
    %1103 = vmatprep.subr.mxu0 0.0
    %1104 = vmatpush1.msra.mxu0 0.0
    %1105 = vmatprep.subr.mxu0 0.0
    %1106 = vmatpush1.msra.mxu0 0.0
    %1107 = vmatprep.subr.mxu0 0.0
    %1108 = vmatpush1.msra.mxu0 0.0
    %1109 = vmatprep.subr.mxu0 0.0
    %1110 = vmatpush1.msra.mxu0 0.0
    %1111 = vmatprep.subr.mxu0 0.0
    %1112 = vmatpush1.msra.mxu0 0.0
    %1113 = vmatprep.subr.mxu0 0.0
    %1114 = vmatpush1.msra.mxu0 0.0
    %1115 = vmatprep.subr.mxu0 0.0
    %1116 = vmatpush1.msra.mxu0 0.0
    %1117 = vmatprep.subr.mxu0 0.0
    %1118 = vmatpush1.msra.mxu0 0.0
    %1119 = vmatprep.subr.mxu0 0.0
    %1120 = vmatpush1.msra.mxu0 0.0
    %1121 = vmatprep.subr.mxu0 0.0
    %1122 = vmatpush1.msra.mxu0 0.0
    %1123 = vmatprep.subr.mxu0 0.0
    %1124 = vmatpush1.msra.mxu0 0.0
    %1125 = vmatprep.subr.mxu0 0.0
    %1126 = vmatpush1.msra.mxu0 0.0
    %1127 = vmatprep.subr.mxu0 0.0
    %1128 = vmatpush1.msra.mxu0 0.0
    %1129 = vmatprep.subr.mxu0 0.0
    %1130 = vmatpush1.msra.mxu0 0.0
    %1131 = vmatprep.subr.mxu0 0.0
    %1132 = vmatpush1.msra.mxu0 0.0
    %1133 = vmatprep.subr.mxu0 0.0
    %1134 = vmatpush1.msra.mxu0 0.0
    %1135 = vmatprep.mubr.f32.mxu0 0.0
    %v1136 = vand.u32 %v94, 4294901760
    %1137 = vmatmul.mubr.f32.gmra.mrb[0].mxu0 %v1136
    %v1138 = vpop.f32.mrb[0].mxu0
    %v1139 = vadd.f32 %v977, %v1138
    %v1140 = vpop.f32.mrb[0].mxu0
    %1141 = vmatprep.mubr.f32.mxu0 0.0
    %v1142 = vand.u32 %v97, 4294901760
    %1143 = vmatmul.mubr.f32.gmra.mrb[0].mxu0 %v1142
    %v1144 = vpop.f32.mrb[0].mxu0
    %v1145 = vadd.f32 %v983, %v1144
    %v1146 = vpop.f32.mrb[0].mxu0
    %1147 = vmatprep.mubr.f32.mxu0 0.0
    %v1148 = vand.u32 %v100, 4294901760
    %1149 = vmatmul.mubr.f32.gmra.mrb[0].mxu0 %v1148
    %v1150 = vpop.f32.mrb[0].mxu0
    %v1151 = vadd.f32 %v989, %v1150
    %v1152 = vpop.f32.mrb[0].mxu0
    %1153 = vmatprep.mubr.f32.mxu0 0.0
    %v1154 = vand.u32 %v103, 4294901760
    %1155 = vmatmul.mubr.f32.gmra.mrb[0].mxu0 %v1154
    %v1156 = vpop.f32.mrb[0].mxu0
    %v1157 = vadd.f32 %v995, %v1156
    %v1158 = vpop.f32.mrb[0].mxu0
    %1159 = vmatprep.mubr.f32.mxu0 0.0
    %v1160 = vand.u32 %v106, 4294901760
    %1161 = vmatmul.mubr.f32.gmra.mrb[0].mxu0 %v1160
    %v1162 = vpop.f32.mrb[0].mxu0
    %v1163 = vadd.f32 %v1001, %v1162
    %v1164 = vpop.f32.mrb[0].mxu0
    %1165 = vmatprep.mubr.f32.mxu0 0.0
    %v1166 = vand.u32 %v109, 4294901760
    %1167 = vmatmul.mubr.f32.gmra.mrb[0].mxu0 %v1166
    %v1168 = vpop.f32.mrb[0].mxu0
    %v1169 = vadd.f32 %v1007, %v1168
    %v1170 = vpop.f32.mrb[0].mxu0
    %1171 = vmatprep.mubr.f32.mxu0 0.0
    %v1172 = vand.u32 %v112, 4294901760
    %1173 = vmatmul.mubr.f32.gmra.mrb[0].mxu0 %v1172
    %v1174 = vpop.f32.mrb[0].mxu0
    %v1175 = vadd.f32 %v1013, %v1174
    %v1176 = vpop.f32.mrb[0].mxu0
    %1177 = vmatprep.mubr.f32.mxu0 0.0
    %v1178 = vand.u32 %v115, 4294901760
    %1179 = vmatmul.mubr.f32.gmra.mrb[0].mxu0 %v1178
    %v1180 = vpop.f32.mrb[0].mxu0
    %v1181 = vadd.f32 %v1019, %v1180
    %v1182 = vpop.f32.mrb[0].mxu0
    %1183 = vmatprep.mubr.f32.mxu0 0.0
    %v1184 = vand.u32 %v118, 4294901760
    %1185 = vmatmul.mubr.f32.gmra.mrb[0].mxu0 %v1184
    %v1186 = vpop.f32.mrb[0].mxu0
    %v1187 = vadd.f32 %v1025, %v1186
    %v1188 = vpop.f32.mrb[0].mxu0
    %1189 = vmatprep.mubr.f32.mxu0 0.0
    %v1190 = vand.u32 %v121, 4294901760
    %1191 = vmatmul.mubr.f32.gmra.mrb[0].mxu0 %v1190
    %v1192 = vpop.f32.mrb[0].mxu0
    %v1193 = vadd.f32 %v1031, %v1192
    %v1194 = vpop.f32.mrb[0].mxu0
    %1195 = vmatprep.mubr.f32.mxu0 0.0
    %v1196 = vand.u32 %v124, 4294901760
    %1197 = vmatmul.mubr.f32.gmra.mrb[0].mxu0 %v1196
    %v1198 = vpop.f32.mrb[0].mxu0
    %v1199 = vadd.f32 %v1037, %v1198
    %v1200 = vpop.f32.mrb[0].mxu0
    %1201 = vmatprep.mubr.f32.mxu0 0.0
    %v1202 = vand.u32 %v127, 4294901760
    %1203 = vmatmul.mubr.f32.gmra.mrb[0].mxu0 %v1202
    %v1204 = vpop.f32.mrb[0].mxu0
    %v1205 = vadd.f32 %v1043, %v1204
    %v1206 = vpop.f32.mrb[0].mxu0
    %1207 = vmatprep.mubr.f32.mxu0 0.0
    %v1208 = vand.u32 %v130, 4294901760
    %1209 = vmatmul.mubr.f32.gmra.mrb[0].mxu0 %v1208
    %v1210 = vpop.f32.mrb[0].mxu0
    %v1211 = vadd.f32 %v1049, %v1210
    %v1212 = vpop.f32.mrb[0].mxu0
    %1213 = vmatprep.mubr.f32.mxu0 0.0
    %v1214 = vand.u32 %v133, 4294901760
    %1215 = vmatmul.mubr.f32.gmra.mrb[0].mxu0 %v1214
    %v1216 = vpop.f32.mrb[0].mxu0
    %v1217 = vadd.f32 %v1055, %v1216
    %v1218 = vpop.f32.mrb[0].mxu0
    %1219 = vmatprep.mubr.f32.mxu0 0.0
    %v1220 = vand.u32 %v136, 4294901760
    %1221 = vmatmul.mubr.f32.gmra.mrb[0].mxu0 %v1220
    %v1222 = vpop.f32.mrb[0].mxu0
    %v1223 = vadd.f32 %v1061, %v1222
    %v1224 = vpop.f32.mrb[0].mxu0
    %1225 = vmatprep.mubr.f32.mxu0 0.0
    %v1226 = vand.u32 %v139, 4294901760
    %1227 = vmatmul.mubr.f32.gmra.mrb[0].mxu0 %v1226
    %v1228 = vpop.f32.mrb[0].mxu0
    %v1229 = vadd.f32 %v1067, %v1228
    %v1230 = vpop.f32.mrb[0].mxu0
    %1231 = vdwg.mxu0
    %v1232 = vld [vmem:[%s2] sm:$0x1]
    %v1234 = vlaneseq
    %v1235 = vshrl.u32 %v1234, 7
    %v1236 = vsub.s32 0, %v1235
    %v1237 = vrot.slane %v1232, %v1236
    %v1239 = vsub.f32 %v1139, %v1237
    %v1240 = vsub.f32 %v1145, %v1237
    %v1241 = vsub.f32 %v1151, %v1237
    %v1242 = vsub.f32 %v1157, %v1237
    %v1243 = vsub.f32 %v1163, %v1237
    %v1244 = vsub.f32 %v1169, %v1237
    %v1245 = vsub.f32 %v1175, %v1237
    %v1246 = vsub.f32 %v1181, %v1237
    %v1247 = vsub.f32 %v1187, %v1237
    %v1248 = vsub.f32 %v1193, %v1237
    %v1249 = vsub.f32 %v1199, %v1237
    %v1250 = vsub.f32 %v1205, %v1237
    %v1251 = vsub.f32 %v1211, %v1237
    %v1252 = vsub.f32 %v1217, %v1237
    %v1253 = vsub.f32 %v1223, %v1237
    %v1254 = vsub.f32 %v1229, %v1237
    %v1255 = vmul.f32 %v1239, %v1239
    %v1256 = vmul.f32 %v1240, %v1240
    %v1257 = vmul.f32 %v1241, %v1241
    %v1258 = vmul.f32 %v1242, %v1242
    %v1259 = vmul.f32 %v1243, %v1243
    %v1260 = vmul.f32 %v1244, %v1244
    %v1261 = vmul.f32 %v1245, %v1245
    %v1262 = vmul.f32 %v1246, %v1246
    %v1263 = vmul.f32 %v1247, %v1247
    %v1264 = vmul.f32 %v1248, %v1248
    %v1265 = vmul.f32 %v1249, %v1249
    %v1266 = vmul.f32 %v1250, %v1250
    %v1267 = vmul.f32 %v1251, %v1251
    %v1268 = vmul.f32 %v1252, %v1252
    %v1269 = vmul.f32 %v1253, %v1253
    %v1270 = vmul.f32 %v1254, %v1254
    %v1271 = vsub.f32 0.0, %v1255
    %v1272 = vsub.f32 0.0, %v1256
    %v1273 = vsub.f32 0.0, %v1257
    %v1274 = vsub.f32 0.0, %v1258
    %v1275 = vsub.f32 0.0, %v1259
    %v1276 = vsub.f32 0.0, %v1260
    %v1277 = vsub.f32 0.0, %v1261
    %v1278 = vsub.f32 0.0, %v1262
    %v1279 = vsub.f32 0.0, %v1263
    %v1280 = vsub.f32 0.0, %v1264
    %v1281 = vsub.f32 0.0, %v1265
    %v1282 = vsub.f32 0.0, %v1266
    %v1283 = vsub.f32 0.0, %v1267
    %v1284 = vsub.f32 0.0, %v1268
    %v1285 = vsub.f32 0.0, %v1269
    %v1286 = vsub.f32 0.0, %v1270
    %v1287 = vmul.f32 %v1271, 1.442695
    %v1288 = vpow.pop %v1287
    %v1289 = vmul.f32 %v1272, 1.442695
    %v1290 = vpow.pop %v1289
    %v1291 = vmul.f32 %v1273, 1.442695
    %v1292 = vpow.pop %v1291
    %v1293 = vmul.f32 %v1274, 1.442695
    %v1294 = vpow.pop %v1293
    %v1295 = vmul.f32 %v1275, 1.442695
    %v1296 = vpow.pop %v1295
    %v1297 = vmul.f32 %v1276, 1.442695
    %v1298 = vpow.pop %v1297
    %v1299 = vmul.f32 %v1277, 1.442695
    %v1300 = vpow.pop %v1299
    %v1301 = vmul.f32 %v1278, 1.442695
    %v1302 = vpow.pop %v1301
    %v1303 = vmul.f32 %v1279, 1.442695
    %v1304 = vpow.pop %v1303
    %v1305 = vmul.f32 %v1280, 1.442695
    %v1306 = vpow.pop %v1305
    %v1307 = vmul.f32 %v1281, 1.442695
    %v1308 = vpow.pop %v1307
    %v1309 = vmul.f32 %v1282, 1.442695
    %v1310 = vpow.pop %v1309
    %v1311 = vmul.f32 %v1283, 1.442695
    %v1312 = vpow.pop %v1311
    %v1313 = vmul.f32 %v1284, 1.442695
    %v1314 = vpow.pop %v1313
    %v1315 = vmul.f32 %v1285, 1.442695
    %v1316 = vpow.pop %v1315
    %v1317 = vmul.f32 %v1286, 1.442695
    %v1318 = vpow.pop %v1317
    %v1319 = vld [vmem:[#allocation7] sm:$0xff]
    %v1320 = vld [vmem:[#allocation7 + $0x8] sm:$0xff]
    %v1321 = vld [vmem:[#allocation7 + $0x10] sm:$0xff]
    %v1322 = vld [vmem:[#allocation7 + $0x18] sm:$0xff]
    %v1323 = vld [vmem:[#allocation7 + $0x20] sm:$0xff]
    %v1324 = vld [vmem:[#allocation7 + $0x28] sm:$0xff]
    %v1325 = vld [vmem:[#allocation7 + $0x30] sm:$0xff]
    %v1326 = vld [vmem:[#allocation7 + $0x38] sm:$0xff]
    %v1327 = vld [vmem:[#allocation7 + $0x40] sm:$0xff]
    %v1328 = vld [vmem:[#allocation7 + $0x48] sm:$0xff]
    %v1329 = vld [vmem:[#allocation7 + $0x50] sm:$0xff]
    %v1330 = vld [vmem:[#allocation7 + $0x58] sm:$0xff]
    %v1331 = vld [vmem:[%s4] sm:$0x1]
    %v1333 = vlaneseq
    %v1334 = vshrl.u32 %v1333, 7
    %v1335 = vsub.s32 0, %v1334
    %v1336 = vrot.slane %v1331, %v1335
    %vm1338 = vcmask 785408
    %v1340 = vsel %vm1338, %v1288, 0
    %v1343 = vsel %vm1338, %v1290, 0
    %v1346 = vsel %vm1338, %v1292, 0
    %v1349 = vsel %vm1338, %v1294, 0
    %v1352 = vsel %vm1338, %v1296, 0
    %v1355 = vsel %vm1338, %v1298, 0
    %v1358 = vsel %vm1338, %v1300, 0
    %v1361 = vsel %vm1338, %v1302, 0
    %v1364 = vsel %vm1338, %v1304, 0
    %v1367 = vsel %vm1338, %v1306, 0
    %v1370 = vsel %vm1338, %v1308, 0
    %v1373 = vsel %vm1338, %v1310, 0
    %v1376 = vsel %vm1338, %v1312, 0
    %v1379 = vsel %vm1338, %v1314, 0
    %v1382 = vsel %vm1338, %v1316, 0
    %v1385 = vsel %vm1338, %v1318, 0
    %1387 = vmatprep.subr.mxu0 0.0
    %v1388 = vand.u32 %v1319, 4294901760
    %1389 = vmatpush1.msra.mxu0 %v1388
    %1390 = vmatprep.subr.mxu0 0.0
    %v1391 = vand.u32 %v1320, 4294901760
    %1392 = vmatpush1.msra.mxu0 %v1391
    %1393 = vmatprep.subr.mxu0 0.0
    %v1394 = vand.u32 %v1321, 4294901760
    %1395 = vmatpush1.msra.mxu0 %v1394
    %1396 = vmatprep.subr.mxu0 0.0
    %v1397 = vand.u32 %v1322, 4294901760
    %1398 = vmatpush1.msra.mxu0 %v1397
    %1399 = vmatprep.subr.mxu0 0.0
    %v1400 = vand.u32 %v1323, 4294901760
    %1401 = vmatpush1.msra.mxu0 %v1400
    %1402 = vmatprep.subr.mxu0 0.0
    %v1403 = vand.u32 %v1324, 4294901760
    %1404 = vmatpush1.msra.mxu0 %v1403
    %1405 = vmatprep.subr.mxu0 0.0
    %v1406 = vand.u32 %v1325, 4294901760
    %1407 = vmatpush1.msra.mxu0 %v1406
    %1408 = vmatprep.subr.mxu0 0.0
    %v1409 = vand.u32 %v1326, 4294901760
    %1410 = vmatpush1.msra.mxu0 %v1409
    %1411 = vmatprep.subr.mxu0 0.0
    %v1412 = vand.u32 %v1327, 4294901760
    %1413 = vmatpush1.msra.mxu0 %v1412
    %1414 = vmatprep.subr.mxu0 0.0
    %v1415 = vand.u32 %v1328, 4294901760
    %1416 = vmatpush1.msra.mxu0 %v1415
    %1417 = vmatprep.subr.mxu0 0.0
    %v1418 = vand.u32 %v1329, 4294901760
    %1419 = vmatpush1.msra.mxu0 %v1418
    %1420 = vmatprep.subr.mxu0 0.0
    %v1421 = vand.u32 %v1330, 4294901760
    %1422 = vmatpush1.msra.mxu0 %v1421
    %1423 = vmatprep.subr.mxu0 0.0
    %1424 = vmatpush1.msra.mxu0 0.0
    %1425 = vmatprep.subr.mxu0 0.0
    %1426 = vmatpush1.msra.mxu0 0.0
    %1427 = vmatprep.subr.mxu0 0.0
    %1428 = vmatpush1.msra.mxu0 0.0
    %1429 = vmatprep.subr.mxu0 0.0
    %1430 = vmatpush1.msra.mxu0 0.0
    %1431 = vmatprep.subr.mxu0 0.0
    %1432 = vmatpush1.msra.mxu0 0.0
    %1433 = vmatprep.subr.mxu0 0.0
    %1434 = vmatpush1.msra.mxu0 0.0
    %1435 = vmatprep.subr.mxu0 0.0
    %1436 = vmatpush1.msra.mxu0 0.0
    %1437 = vmatprep.subr.mxu0 0.0
    %1438 = vmatpush1.msra.mxu0 0.0
    %1439 = vmatprep.subr.mxu0 0.0
    %1440 = vmatpush1.msra.mxu0 0.0
    %1441 = vmatprep.subr.mxu0 0.0
    %1442 = vmatpush1.msra.mxu0 0.0
    %1443 = vmatprep.subr.mxu0 0.0
    %1444 = vmatpush1.msra.mxu0 0.0
    %1445 = vmatprep.subr.mxu0 0.0
    %1446 = vmatpush1.msra.mxu0 0.0
    %1447 = vmatprep.subr.mxu0 0.0
    %1448 = vmatpush1.msra.mxu0 0.0
    %1449 = vmatprep.subr.mxu0 0.0
    %1450 = vmatpush1.msra.mxu0 0.0
    %1451 = vmatprep.subr.mxu0 0.0
    %1452 = vmatpush1.msra.mxu0 0.0
    %1453 = vmatprep.subr.mxu0 0.0
    %1454 = vmatpush1.msra.mxu0 0.0
    %1455 = vmatprep.subr.mxu0 0.0
    %1456 = vmatpush1.msra.mxu0 0.0
    %1457 = vmatprep.subr.mxu0 0.0
    %1458 = vmatpush1.msra.mxu0 0.0
    %1459 = vmatprep.subr.mxu0 0.0
    %1460 = vmatpush1.msra.mxu0 0.0
    %1461 = vmatprep.subr.mxu0 0.0
    %1462 = vmatpush1.msra.mxu0 0.0
    %1463 = vmatprep.mubr.f32.mxu0 0.0
    %v1464 = vand.u32 %v1340, 4294901760
    %v1465 = vsub.f32 %v1340, %v1464
    %v1466 = vand.u32 %v1465, 4294901760
    %v1467 = vsub.f32 %v1465, %v1466
    %v1468 = vand.u32 %v1467, 4294901760
    %1469 = vmatmul.mubr.f32.gmra.mrb[0].mxu0 %v1468
    %v1470 = vpop.f32.mrb[0].mxu0
    %v1471 = vadd.f32 %v1336, %v1470
    %v1472 = vpop.f32.mrb[0].mxu0
    %1473 = vmatprep.mubr.f32.mxu0 0.0
    %v1474 = vand.u32 %v1343, 4294901760
    %v1475 = vsub.f32 %v1343, %v1474
    %v1476 = vand.u32 %v1475, 4294901760
    %v1477 = vsub.f32 %v1475, %v1476
    %v1478 = vand.u32 %v1477, 4294901760
    %1479 = vmatmul.mubr.f32.gmra.mrb[0].mxu0 %v1478
    %v1480 = vpop.f32.mrb[0].mxu0
    %v1481 = vadd.f32 %v1336, %v1480
    %v1482 = vpop.f32.mrb[0].mxu0
    %1483 = vmatprep.mubr.f32.mxu0 0.0
    %v1484 = vand.u32 %v1346, 4294901760
    %v1485 = vsub.f32 %v1346, %v1484
    %v1486 = vand.u32 %v1485, 4294901760
    %v1487 = vsub.f32 %v1485, %v1486
    %v1488 = vand.u32 %v1487, 4294901760
    %1489 = vmatmul.mubr.f32.gmra.mrb[0].mxu0 %v1488
    %v1490 = vpop.f32.mrb[0].mxu0
    %v1491 = vadd.f32 %v1336, %v1490
    %v1492 = vpop.f32.mrb[0].mxu0
    %1493 = vmatprep.mubr.f32.mxu0 0.0
    %v1494 = vand.u32 %v1349, 4294901760
    %v1495 = vsub.f32 %v1349, %v1494
    %v1496 = vand.u32 %v1495, 4294901760
    %v1497 = vsub.f32 %v1495, %v1496
    %v1498 = vand.u32 %v1497, 4294901760
    %1499 = vmatmul.mubr.f32.gmra.mrb[0].mxu0 %v1498
    %v1500 = vpop.f32.mrb[0].mxu0
    %v1501 = vadd.f32 %v1336, %v1500
    %v1502 = vpop.f32.mrb[0].mxu0
    %1503 = vmatprep.mubr.f32.mxu0 0.0
    %v1504 = vand.u32 %v1352, 4294901760
    %v1505 = vsub.f32 %v1352, %v1504
    %v1506 = vand.u32 %v1505, 4294901760
    %v1507 = vsub.f32 %v1505, %v1506
    %v1508 = vand.u32 %v1507, 4294901760
    %1509 = vmatmul.mubr.f32.gmra.mrb[0].mxu0 %v1508
    %v1510 = vpop.f32.mrb[0].mxu0
    %v1511 = vadd.f32 %v1336, %v1510
    %v1512 = vpop.f32.mrb[0].mxu0
    %1513 = vmatprep.mubr.f32.mxu0 0.0
    %v1514 = vand.u32 %v1355, 4294901760
    %v1515 = vsub.f32 %v1355, %v1514
    %v1516 = vand.u32 %v1515, 4294901760
    %v1517 = vsub.f32 %v1515, %v1516
    %v1518 = vand.u32 %v1517, 4294901760
    %1519 = vmatmul.mubr.f32.gmra.mrb[0].mxu0 %v1518
    %v1520 = vpop.f32.mrb[0].mxu0
    %v1521 = vadd.f32 %v1336, %v1520
    %v1522 = vpop.f32.mrb[0].mxu0
    %1523 = vmatprep.mubr.f32.mxu0 0.0
    %v1524 = vand.u32 %v1358, 4294901760
    %v1525 = vsub.f32 %v1358, %v1524
    %v1526 = vand.u32 %v1525, 4294901760
    %v1527 = vsub.f32 %v1525, %v1526
    %v1528 = vand.u32 %v1527, 4294901760
    %1529 = vmatmul.mubr.f32.gmra.mrb[0].mxu0 %v1528
    %v1530 = vpop.f32.mrb[0].mxu0
    %v1531 = vadd.f32 %v1336, %v1530
    %v1532 = vpop.f32.mrb[0].mxu0
    %1533 = vmatprep.mubr.f32.mxu0 0.0
    %v1534 = vand.u32 %v1361, 4294901760
    %v1535 = vsub.f32 %v1361, %v1534
    %v1536 = vand.u32 %v1535, 4294901760
    %v1537 = vsub.f32 %v1535, %v1536
    %v1538 = vand.u32 %v1537, 4294901760
    %1539 = vmatmul.mubr.f32.gmra.mrb[0].mxu0 %v1538
    %v1540 = vpop.f32.mrb[0].mxu0
    %v1541 = vadd.f32 %v1336, %v1540
    %v1542 = vpop.f32.mrb[0].mxu0
    %1543 = vmatprep.mubr.f32.mxu0 0.0
    %v1544 = vand.u32 %v1364, 4294901760
    %v1545 = vsub.f32 %v1364, %v1544
    %v1546 = vand.u32 %v1545, 4294901760
    %v1547 = vsub.f32 %v1545, %v1546
    %v1548 = vand.u32 %v1547, 4294901760
    %1549 = vmatmul.mubr.f32.gmra.mrb[0].mxu0 %v1548
    %v1550 = vpop.f32.mrb[0].mxu0
    %v1551 = vadd.f32 %v1336, %v1550
    %v1552 = vpop.f32.mrb[0].mxu0
    %1553 = vmatprep.mubr.f32.mxu0 0.0
    %v1554 = vand.u32 %v1367, 4294901760
    %v1555 = vsub.f32 %v1367, %v1554
    %v1556 = vand.u32 %v1555, 4294901760
    %v1557 = vsub.f32 %v1555, %v1556
    %v1558 = vand.u32 %v1557, 4294901760
    %1559 = vmatmul.mubr.f32.gmra.mrb[0].mxu0 %v1558
    %v1560 = vpop.f32.mrb[0].mxu0
    %v1561 = vadd.f32 %v1336, %v1560
    %v1562 = vpop.f32.mrb[0].mxu0
    %1563 = vmatprep.mubr.f32.mxu0 0.0
    %v1564 = vand.u32 %v1370, 4294901760
    %v1565 = vsub.f32 %v1370, %v1564
    %v1566 = vand.u32 %v1565, 4294901760
    %v1567 = vsub.f32 %v1565, %v1566
    %v1568 = vand.u32 %v1567, 4294901760
    %1569 = vmatmul.mubr.f32.gmra.mrb[0].mxu0 %v1568
    %v1570 = vpop.f32.mrb[0].mxu0
    %v1571 = vadd.f32 %v1336, %v1570
    %v1572 = vpop.f32.mrb[0].mxu0
    %1573 = vmatprep.mubr.f32.mxu0 0.0
    %v1574 = vand.u32 %v1373, 4294901760
    %v1575 = vsub.f32 %v1373, %v1574
    %v1576 = vand.u32 %v1575, 4294901760
    %v1577 = vsub.f32 %v1575, %v1576
    %v1578 = vand.u32 %v1577, 4294901760
    %1579 = vmatmul.mubr.f32.gmra.mrb[0].mxu0 %v1578
    %v1580 = vpop.f32.mrb[0].mxu0
    %v1581 = vadd.f32 %v1336, %v1580
    %v1582 = vpop.f32.mrb[0].mxu0
    %1583 = vmatprep.mubr.f32.mxu0 0.0
    %v1584 = vand.u32 %v1376, 4294901760
    %v1585 = vsub.f32 %v1376, %v1584
    %v1586 = vand.u32 %v1585, 4294901760
    %v1587 = vsub.f32 %v1585, %v1586
    %v1588 = vand.u32 %v1587, 4294901760
    %1589 = vmatmul.mubr.f32.gmra.mrb[0].mxu0 %v1588
    %v1590 = vpop.f32.mrb[0].mxu0
    %v1591 = vadd.f32 %v1336, %v1590
    %v1592 = vpop.f32.mrb[0].mxu0
    %1593 = vmatprep.mubr.f32.mxu0 0.0
    %v1594 = vand.u32 %v1379, 4294901760
    %v1595 = vsub.f32 %v1379, %v1594
    %v1596 = vand.u32 %v1595, 4294901760
    %v1597 = vsub.f32 %v1595, %v1596
    %v1598 = vand.u32 %v1597, 4294901760
    %1599 = vmatmul.mubr.f32.gmra.mrb[0].mxu0 %v1598
    %v1600 = vpop.f32.mrb[0].mxu0
    %v1601 = vadd.f32 %v1336, %v1600
    %v1602 = vpop.f32.mrb[0].mxu0
    %1603 = vmatprep.mubr.f32.mxu0 0.0
    %v1604 = vand.u32 %v1382, 4294901760
    %v1605 = vsub.f32 %v1382, %v1604
    %v1606 = vand.u32 %v1605, 4294901760
    %v1607 = vsub.f32 %v1605, %v1606
    %v1608 = vand.u32 %v1607, 4294901760
    %1609 = vmatmul.mubr.f32.gmra.mrb[0].mxu0 %v1608
    %v1610 = vpop.f32.mrb[0].mxu0
    %v1611 = vadd.f32 %v1336, %v1610
    %v1612 = vpop.f32.mrb[0].mxu0
    %1613 = vmatprep.mubr.f32.mxu0 0.0
    %v1614 = vand.u32 %v1385, 4294901760
    %v1615 = vsub.f32 %v1385, %v1614
    %v1616 = vand.u32 %v1615, 4294901760
    %v1617 = vsub.f32 %v1615, %v1616
    %v1618 = vand.u32 %v1617, 4294901760
    %1619 = vmatmul.mubr.f32.gmra.mrb[0].mxu0 %v1618
    %v1620 = vpop.f32.mrb[0].mxu0
    %v1621 = vadd.f32 %v1336, %v1620
    %v1622 = vpop.f32.mrb[0].mxu0
    %1623 = vdwg.mxu0
    %1624 = vmatprep.subr.mxu0 0.0
    %v1625 = vand.u32 %v1319, 4294901760
    %v1626 = vsub.f32 %v1319, %v1625
    %v1627 = vand.u32 %v1626, 4294901760
    %v1628 = vsub.f32 %v1626, %v1627
    %v1629 = vand.u32 %v1628, 4294901760
    %1630 = vmatpush1.msra.mxu0 %v1629
    %1631 = vmatprep.subr.mxu0 0.0
    %v1632 = vand.u32 %v1320, 4294901760
    %v1633 = vsub.f32 %v1320, %v1632
    %v1634 = vand.u32 %v1633, 4294901760
    %v1635 = vsub.f32 %v1633, %v1634
    %v1636 = vand.u32 %v1635, 4294901760
    %1637 = vmatpush1.msra.mxu0 %v1636
    %1638 = vmatprep.subr.mxu0 0.0
    %v1639 = vand.u32 %v1321, 4294901760
    %v1640 = vsub.f32 %v1321, %v1639
    %v1641 = vand.u32 %v1640, 4294901760
    %v1642 = vsub.f32 %v1640, %v1641
    %v1643 = vand.u32 %v1642, 4294901760
    %1644 = vmatpush1.msra.mxu0 %v1643
    %1645 = vmatprep.subr.mxu0 0.0
    %v1646 = vand.u32 %v1322, 4294901760
    %v1647 = vsub.f32 %v1322, %v1646
    %v1648 = vand.u32 %v1647, 4294901760
    %v1649 = vsub.f32 %v1647, %v1648
    %v1650 = vand.u32 %v1649, 4294901760
    %1651 = vmatpush1.msra.mxu0 %v1650
    %1652 = vmatprep.subr.mxu0 0.0
    %v1653 = vand.u32 %v1323, 4294901760
    %v1654 = vsub.f32 %v1323, %v1653
    %v1655 = vand.u32 %v1654, 4294901760
    %v1656 = vsub.f32 %v1654, %v1655
    %v1657 = vand.u32 %v1656, 4294901760
    %1658 = vmatpush1.msra.mxu0 %v1657
    %1659 = vmatprep.subr.mxu0 0.0
    %v1660 = vand.u32 %v1324, 4294901760
    %v1661 = vsub.f32 %v1324, %v1660
    %v1662 = vand.u32 %v1661, 4294901760
    %v1663 = vsub.f32 %v1661, %v1662
    %v1664 = vand.u32 %v1663, 4294901760
    %1665 = vmatpush1.msra.mxu0 %v1664
    %1666 = vmatprep.subr.mxu0 0.0
    %v1667 = vand.u32 %v1325, 4294901760
    %v1668 = vsub.f32 %v1325, %v1667
    %v1669 = vand.u32 %v1668, 4294901760
    %v1670 = vsub.f32 %v1668, %v1669
    %v1671 = vand.u32 %v1670, 4294901760
    %1672 = vmatpush1.msra.mxu0 %v1671
    %1673 = vmatprep.subr.mxu0 0.0
    %v1674 = vand.u32 %v1326, 4294901760
    %v1675 = vsub.f32 %v1326, %v1674
    %v1676 = vand.u32 %v1675, 4294901760
    %v1677 = vsub.f32 %v1675, %v1676
    %v1678 = vand.u32 %v1677, 4294901760
    %1679 = vmatpush1.msra.mxu0 %v1678
    %1680 = vmatprep.subr.mxu0 0.0
    %v1681 = vand.u32 %v1327, 4294901760
    %v1682 = vsub.f32 %v1327, %v1681
    %v1683 = vand.u32 %v1682, 4294901760
    %v1684 = vsub.f32 %v1682, %v1683
    %v1685 = vand.u32 %v1684, 4294901760
    %1686 = vmatpush1.msra.mxu0 %v1685
    %1687 = vmatprep.subr.mxu0 0.0
    %v1688 = vand.u32 %v1328, 4294901760
    %v1689 = vsub.f32 %v1328, %v1688
    %v1690 = vand.u32 %v1689, 4294901760
    %v1691 = vsub.f32 %v1689, %v1690
    %v1692 = vand.u32 %v1691, 4294901760
    %1693 = vmatpush1.msra.mxu0 %v1692
    %1694 = vmatprep.subr.mxu0 0.0
    %v1695 = vand.u32 %v1329, 4294901760
    %v1696 = vsub.f32 %v1329, %v1695
    %v1697 = vand.u32 %v1696, 4294901760
    %v1698 = vsub.f32 %v1696, %v1697
    %v1699 = vand.u32 %v1698, 4294901760
    %1700 = vmatpush1.msra.mxu0 %v1699
    %1701 = vmatprep.subr.mxu0 0.0
    %v1702 = vand.u32 %v1330, 4294901760
    %v1703 = vsub.f32 %v1330, %v1702
    %v1704 = vand.u32 %v1703, 4294901760
    %v1705 = vsub.f32 %v1703, %v1704
    %v1706 = vand.u32 %v1705, 4294901760
    %1707 = vmatpush1.msra.mxu0 %v1706
    %1708 = vmatprep.subr.mxu0 0.0
    %1709 = vmatpush1.msra.mxu0 0.0
    %1710 = vmatprep.subr.mxu0 0.0
    %1711 = vmatpush1.msra.mxu0 0.0
    %1712 = vmatprep.subr.mxu0 0.0
    %1713 = vmatpush1.msra.mxu0 0.0
    %1714 = vmatprep.subr.mxu0 0.0
    %1715 = vmatpush1.msra.mxu0 0.0
    %1716 = vmatprep.subr.mxu0 0.0
    %1717 = vmatpush1.msra.mxu0 0.0
    %1718 = vmatprep.subr.mxu0 0.0
    %1719 = vmatpush1.msra.mxu0 0.0
    %1720 = vmatprep.subr.mxu0 0.0
    %1721 = vmatpush1.msra.mxu0 0.0
    %1722 = vmatprep.subr.mxu0 0.0
    %1723 = vmatpush1.msra.mxu0 0.0
    %1724 = vmatprep.subr.mxu0 0.0
    %1725 = vmatpush1.msra.mxu0 0.0
    %1726 = vmatprep.subr.mxu0 0.0
    %1727 = vmatpush1.msra.mxu0 0.0
    %1728 = vmatprep.subr.mxu0 0.0
    %1729 = vmatpush1.msra.mxu0 0.0
    %1730 = vmatprep.subr.mxu0 0.0
    %1731 = vmatpush1.msra.mxu0 0.0
    %1732 = vmatprep.subr.mxu0 0.0
    %1733 = vmatpush1.msra.mxu0 0.0
    %1734 = vmatprep.subr.mxu0 0.0
    %1735 = vmatpush1.msra.mxu0 0.0
    %1736 = vmatprep.subr.mxu0 0.0
    %1737 = vmatpush1.msra.mxu0 0.0
    %1738 = vmatprep.subr.mxu0 0.0
    %1739 = vmatpush1.msra.mxu0 0.0
    %1740 = vmatprep.subr.mxu0 0.0
    %1741 = vmatpush1.msra.mxu0 0.0
    %1742 = vmatprep.subr.mxu0 0.0
    %1743 = vmatpush1.msra.mxu0 0.0
    %1744 = vmatprep.subr.mxu0 0.0
    %1745 = vmatpush1.msra.mxu0 0.0
    %1746 = vmatprep.subr.mxu0 0.0
    %1747 = vmatpush1.msra.mxu0 0.0
    %1748 = vmatprep.mubr.f32.mxu0 0.0
    %v1749 = vand.u32 %v1340, 4294901760
    %1750 = vmatmul.mubr.f32.gmra.mrb[0].mxu0 %v1749
    %v1751 = vpop.f32.mrb[0].mxu0
    %v1752 = vadd.f32 %v1471, %v1751
    %v1753 = vpop.f32.mrb[0].mxu0
    %1754 = vmatprep.mubr.f32.mxu0 0.0
    %v1755 = vand.u32 %v1343, 4294901760
    %1756 = vmatmul.mubr.f32.gmra.mrb[0].mxu0 %v1755
    %v1757 = vpop.f32.mrb[0].mxu0
    %v1758 = vadd.f32 %v1481, %v1757
    %v1759 = vpop.f32.mrb[0].mxu0
    %1760 = vmatprep.mubr.f32.mxu0 0.0
    %v1761 = vand.u32 %v1346, 4294901760
    %1762 = vmatmul.mubr.f32.gmra.mrb[0].mxu0 %v1761
    %v1763 = vpop.f32.mrb[0].mxu0
    %v1764 = vadd.f32 %v1491, %v1763
    %v1765 = vpop.f32.mrb[0].mxu0
    %1766 = vmatprep.mubr.f32.mxu0 0.0
    %v1767 = vand.u32 %v1349, 4294901760
    %1768 = vmatmul.mubr.f32.gmra.mrb[0].mxu0 %v1767
    %v1769 = vpop.f32.mrb[0].mxu0
    %v1770 = vadd.f32 %v1501, %v1769
    %v1771 = vpop.f32.mrb[0].mxu0
    %1772 = vmatprep.mubr.f32.mxu0 0.0
    %v1773 = vand.u32 %v1352, 4294901760
    %1774 = vmatmul.mubr.f32.gmra.mrb[0].mxu0 %v1773
    %v1775 = vpop.f32.mrb[0].mxu0
    %v1776 = vadd.f32 %v1511, %v1775
    %v1777 = vpop.f32.mrb[0].mxu0
    %1778 = vmatprep.mubr.f32.mxu0 0.0
    %v1779 = vand.u32 %v1355, 4294901760
    %1780 = vmatmul.mubr.f32.gmra.mrb[0].mxu0 %v1779
    %v1781 = vpop.f32.mrb[0].mxu0
    %v1782 = vadd.f32 %v1521, %v1781
    %v1783 = vpop.f32.mrb[0].mxu0
    %1784 = vmatprep.mubr.f32.mxu0 0.0
    %v1785 = vand.u32 %v1358, 4294901760
    %1786 = vmatmul.mubr.f32.gmra.mrb[0].mxu0 %v1785
    %v1787 = vpop.f32.mrb[0].mxu0
    %v1788 = vadd.f32 %v1531, %v1787
    %v1789 = vpop.f32.mrb[0].mxu0
    %1790 = vmatprep.mubr.f32.mxu0 0.0
    %v1791 = vand.u32 %v1361, 4294901760
    %1792 = vmatmul.mubr.f32.gmra.mrb[0].mxu0 %v1791
    %v1793 = vpop.f32.mrb[0].mxu0
    %v1794 = vadd.f32 %v1541, %v1793
    %v1795 = vpop.f32.mrb[0].mxu0
    %1796 = vmatprep.mubr.f32.mxu0 0.0
    %v1797 = vand.u32 %v1364, 4294901760
    %1798 = vmatmul.mubr.f32.gmra.mrb[0].mxu0 %v1797
    %v1799 = vpop.f32.mrb[0].mxu0
    %v1800 = vadd.f32 %v1551, %v1799
    %v1801 = vpop.f32.mrb[0].mxu0
    %1802 = vmatprep.mubr.f32.mxu0 0.0
    %v1803 = vand.u32 %v1367, 4294901760
    %1804 = vmatmul.mubr.f32.gmra.mrb[0].mxu0 %v1803
    %v1805 = vpop.f32.mrb[0].mxu0
    %v1806 = vadd.f32 %v1561, %v1805
    %v1807 = vpop.f32.mrb[0].mxu0
    %1808 = vmatprep.mubr.f32.mxu0 0.0
    %v1809 = vand.u32 %v1370, 4294901760
    %1810 = vmatmul.mubr.f32.gmra.mrb[0].mxu0 %v1809
    %v1811 = vpop.f32.mrb[0].mxu0
    %v1812 = vadd.f32 %v1571, %v1811
    %v1813 = vpop.f32.mrb[0].mxu0
    %1814 = vmatprep.mubr.f32.mxu0 0.0
    %v1815 = vand.u32 %v1373, 4294901760
    %1816 = vmatmul.mubr.f32.gmra.mrb[0].mxu0 %v1815
    %v1817 = vpop.f32.mrb[0].mxu0
    %v1818 = vadd.f32 %v1581, %v1817
    %v1819 = vpop.f32.mrb[0].mxu0
    %1820 = vmatprep.mubr.f32.mxu0 0.0
    %v1821 = vand.u32 %v1376, 4294901760
    %1822 = vmatmul.mubr.f32.gmra.mrb[0].mxu0 %v1821
    %v1823 = vpop.f32.mrb[0].mxu0
    %v1824 = vadd.f32 %v1591, %v1823
    %v1825 = vpop.f32.mrb[0].mxu0
    %1826 = vmatprep.mubr.f32.mxu0 0.0
    %v1827 = vand.u32 %v1379, 4294901760
    %1828 = vmatmul.mubr.f32.gmra.mrb[0].mxu0 %v1827
    %v1829 = vpop.f32.mrb[0].mxu0
    %v1830 = vadd.f32 %v1601, %v1829
    %v1831 = vpop.f32.mrb[0].mxu0
    %1832 = vmatprep.mubr.f32.mxu0 0.0
    %v1833 = vand.u32 %v1382, 4294901760
    %1834 = vmatmul.mubr.f32.gmra.mrb[0].mxu0 %v1833
    %v1835 = vpop.f32.mrb[0].mxu0
    %v1836 = vadd.f32 %v1611, %v1835
    %v1837 = vpop.f32.mrb[0].mxu0
    %1838 = vmatprep.mubr.f32.mxu0 0.0
    %v1839 = vand.u32 %v1385, 4294901760
    %1840 = vmatmul.mubr.f32.gmra.mrb[0].mxu0 %v1839
    %v1841 = vpop.f32.mrb[0].mxu0
    %v1842 = vadd.f32 %v1621, %v1841
    %v1843 = vpop.f32.mrb[0].mxu0
    %1844 = vdwg.mxu0
    %1845 = vmatprep.subr.mxu0 0.0
    %v1846 = vand.u32 %v1319, 4294901760
    %v1847 = vsub.f32 %v1319, %v1846
    %1848 = vmatpush1.msra.mxu0 %v1847
    %1849 = vmatprep.subr.mxu0 0.0
    %v1850 = vand.u32 %v1320, 4294901760
    %v1851 = vsub.f32 %v1320, %v1850
    %1852 = vmatpush1.msra.mxu0 %v1851
    %1853 = vmatprep.subr.mxu0 0.0
    %v1854 = vand.u32 %v1321, 4294901760
    %v1855 = vsub.f32 %v1321, %v1854
    %1856 = vmatpush1.msra.mxu0 %v1855
    %1857 = vmatprep.subr.mxu0 0.0
    %v1858 = vand.u32 %v1322, 4294901760
    %v1859 = vsub.f32 %v1322, %v1858
    %1860 = vmatpush1.msra.mxu0 %v1859
    %1861 = vmatprep.subr.mxu0 0.0
    %v1862 = vand.u32 %v1323, 4294901760
    %v1863 = vsub.f32 %v1323, %v1862
    %1864 = vmatpush1.msra.mxu0 %v1863
    %1865 = vmatprep.subr.mxu0 0.0
    %v1866 = vand.u32 %v1324, 4294901760
    %v1867 = vsub.f32 %v1324, %v1866
    %1868 = vmatpush1.msra.mxu0 %v1867
    %1869 = vmatprep.subr.mxu0 0.0
    %v1870 = vand.u32 %v1325, 4294901760
    %v1871 = vsub.f32 %v1325, %v1870
    %1872 = vmatpush1.msra.mxu0 %v1871
    %1873 = vmatprep.subr.mxu0 0.0
    %v1874 = vand.u32 %v1326, 4294901760
    %v1875 = vsub.f32 %v1326, %v1874
    %1876 = vmatpush1.msra.mxu0 %v1875
    %1877 = vmatprep.subr.mxu0 0.0
    %v1878 = vand.u32 %v1327, 4294901760
    %v1879 = vsub.f32 %v1327, %v1878
    %1880 = vmatpush1.msra.mxu0 %v1879
    %1881 = vmatprep.subr.mxu0 0.0
    %v1882 = vand.u32 %v1328, 4294901760
    %v1883 = vsub.f32 %v1328, %v1882
    %1884 = vmatpush1.msra.mxu0 %v1883
    %1885 = vmatprep.subr.mxu0 0.0
    %v1886 = vand.u32 %v1329, 4294901760
    %v1887 = vsub.f32 %v1329, %v1886
    %1888 = vmatpush1.msra.mxu0 %v1887
    %1889 = vmatprep.subr.mxu0 0.0
    %v1890 = vand.u32 %v1330, 4294901760
    %v1891 = vsub.f32 %v1330, %v1890
    %1892 = vmatpush1.msra.mxu0 %v1891
    %1893 = vmatprep.subr.mxu0 0.0
    %1894 = vmatpush1.msra.mxu0 0.0
    %1895 = vmatprep.subr.mxu0 0.0
    %1896 = vmatpush1.msra.mxu0 0.0
    %1897 = vmatprep.subr.mxu0 0.0
    %1898 = vmatpush1.msra.mxu0 0.0
    %1899 = vmatprep.subr.mxu0 0.0
    %1900 = vmatpush1.msra.mxu0 0.0
    %1901 = vmatprep.subr.mxu0 0.0
    %1902 = vmatpush1.msra.mxu0 0.0
    %1903 = vmatprep.subr.mxu0 0.0
    %1904 = vmatpush1.msra.mxu0 0.0
    %1905 = vmatprep.subr.mxu0 0.0
    %1906 = vmatpush1.msra.mxu0 0.0
    %1907 = vmatprep.subr.mxu0 0.0
    %1908 = vmatpush1.msra.mxu0 0.0
    %1909 = vmatprep.subr.mxu0 0.0
    %1910 = vmatpush1.msra.mxu0 0.0
    %1911 = vmatprep.subr.mxu0 0.0
    %1912 = vmatpush1.msra.mxu0 0.0
    %1913 = vmatprep.subr.mxu0 0.0
    %1914 = vmatpush1.msra.mxu0 0.0
    %1915 = vmatprep.subr.mxu0 0.0
    %1916 = vmatpush1.msra.mxu0 0.0
    %1917 = vmatprep.subr.mxu0 0.0
    %1918 = vmatpush1.msra.mxu0 0.0
    %1919 = vmatprep.subr.mxu0 0.0
    %1920 = vmatpush1.msra.mxu0 0.0
    %1921 = vmatprep.subr.mxu0 0.0
    %1922 = vmatpush1.msra.mxu0 0.0
    %1923 = vmatprep.subr.mxu0 0.0
    %1924 = vmatpush1.msra.mxu0 0.0
    %1925 = vmatprep.subr.mxu0 0.0
    %1926 = vmatpush1.msra.mxu0 0.0
    %1927 = vmatprep.subr.mxu0 0.0
    %1928 = vmatpush1.msra.mxu0 0.0
    %1929 = vmatprep.subr.mxu0 0.0
    %1930 = vmatpush1.msra.mxu0 0.0
    %1931 = vmatprep.subr.mxu0 0.0
    %1932 = vmatpush1.msra.mxu0 0.0
    %1933 = vmatprep.mubr.f32.mxu0 0.0
    %v1934 = vand.u32 %v1340, 4294901760
    %v1935 = vsub.f32 %v1340, %v1934
    %1936 = vmatmul.mubr.f32.gmra.mrb[0].mxu0 %v1935
    %v1937 = vpop.f32.mrb[0].mxu0
    %v1938 = vadd.f32 %v1752, %v1937
    %v1939 = vpop.f32.mrb[0].mxu0
    %1940 = vmatprep.mubr.f32.mxu0 0.0
    %v1941 = vand.u32 %v1343, 4294901760
    %v1942 = vsub.f32 %v1343, %v1941
    %1943 = vmatmul.mubr.f32.gmra.mrb[0].mxu0 %v1942
    %v1944 = vpop.f32.mrb[0].mxu0
    %v1945 = vadd.f32 %v1758, %v1944
    %v1946 = vpop.f32.mrb[0].mxu0
    %1947 = vmatprep.mubr.f32.mxu0 0.0
    %v1948 = vand.u32 %v1346, 4294901760
    %v1949 = vsub.f32 %v1346, %v1948
    %1950 = vmatmul.mubr.f32.gmra.mrb[0].mxu0 %v1949
    %v1951 = vpop.f32.mrb[0].mxu0
    %v1952 = vadd.f32 %v1764, %v1951
    %v1953 = vpop.f32.mrb[0].mxu0
    %1954 = vmatprep.mubr.f32.mxu0 0.0
    %v1955 = vand.u32 %v1349, 4294901760
    %v1956 = vsub.f32 %v1349, %v1955
    %1957 = vmatmul.mubr.f32.gmra.mrb[0].mxu0 %v1956
    %v1958 = vpop.f32.mrb[0].mxu0
    %v1959 = vadd.f32 %v1770, %v1958
    %v1960 = vpop.f32.mrb[0].mxu0
    %1961 = vmatprep.mubr.f32.mxu0 0.0
    %v1962 = vand.u32 %v1352, 4294901760
    %v1963 = vsub.f32 %v1352, %v1962
    %1964 = vmatmul.mubr.f32.gmra.mrb[0].mxu0 %v1963
    %v1965 = vpop.f32.mrb[0].mxu0
    %v1966 = vadd.f32 %v1776, %v1965
    %v1967 = vpop.f32.mrb[0].mxu0
    %1968 = vmatprep.mubr.f32.mxu0 0.0
    %v1969 = vand.u32 %v1355, 4294901760
    %v1970 = vsub.f32 %v1355, %v1969
    %1971 = vmatmul.mubr.f32.gmra.mrb[0].mxu0 %v1970
    %v1972 = vpop.f32.mrb[0].mxu0
    %v1973 = vadd.f32 %v1782, %v1972
    %v1974 = vpop.f32.mrb[0].mxu0
    %1975 = vmatprep.mubr.f32.mxu0 0.0
    %v1976 = vand.u32 %v1358, 4294901760
    %v1977 = vsub.f32 %v1358, %v1976
    %1978 = vmatmul.mubr.f32.gmra.mrb[0].mxu0 %v1977
    %v1979 = vpop.f32.mrb[0].mxu0
    %v1980 = vadd.f32 %v1788, %v1979
    %v1981 = vpop.f32.mrb[0].mxu0
    %1982 = vmatprep.mubr.f32.mxu0 0.0
    %v1983 = vand.u32 %v1361, 4294901760
    %v1984 = vsub.f32 %v1361, %v1983
    %1985 = vmatmul.mubr.f32.gmra.mrb[0].mxu0 %v1984
    %v1986 = vpop.f32.mrb[0].mxu0
    %v1987 = vadd.f32 %v1794, %v1986
    %v1988 = vpop.f32.mrb[0].mxu0
    %1989 = vmatprep.mubr.f32.mxu0 0.0
    %v1990 = vand.u32 %v1364, 4294901760
    %v1991 = vsub.f32 %v1364, %v1990
    %1992 = vmatmul.mubr.f32.gmra.mrb[0].mxu0 %v1991
    %v1993 = vpop.f32.mrb[0].mxu0
    %v1994 = vadd.f32 %v1800, %v1993
    %v1995 = vpop.f32.mrb[0].mxu0
    %1996 = vmatprep.mubr.f32.mxu0 0.0
    %v1997 = vand.u32 %v1367, 4294901760
    %v1998 = vsub.f32 %v1367, %v1997
    %1999 = vmatmul.mubr.f32.gmra.mrb[0].mxu0 %v1998
    %v2000 = vpop.f32.mrb[0].mxu0
    %v2001 = vadd.f32 %v1806, %v2000
    %v2002 = vpop.f32.mrb[0].mxu0
    %2003 = vmatprep.mubr.f32.mxu0 0.0
    %v2004 = vand.u32 %v1370, 4294901760
    %v2005 = vsub.f32 %v1370, %v2004
    %2006 = vmatmul.mubr.f32.gmra.mrb[0].mxu0 %v2005
    %v2007 = vpop.f32.mrb[0].mxu0
    %v2008 = vadd.f32 %v1812, %v2007
    %v2009 = vpop.f32.mrb[0].mxu0
    %2010 = vmatprep.mubr.f32.mxu0 0.0
    %v2011 = vand.u32 %v1373, 4294901760
    %v2012 = vsub.f32 %v1373, %v2011
    %2013 = vmatmul.mubr.f32.gmra.mrb[0].mxu0 %v2012
    %v2014 = vpop.f32.mrb[0].mxu0
    %v2015 = vadd.f32 %v1818, %v2014
    %v2016 = vpop.f32.mrb[0].mxu0
    %2017 = vmatprep.mubr.f32.mxu0 0.0
    %v2018 = vand.u32 %v1376, 4294901760
    %v2019 = vsub.f32 %v1376, %v2018
    %2020 = vmatmul.mubr.f32.gmra.mrb[0].mxu0 %v2019
    %v2021 = vpop.f32.mrb[0].mxu0
    %v2022 = vadd.f32 %v1824, %v2021
    %v2023 = vpop.f32.mrb[0].mxu0
    %2024 = vmatprep.mubr.f32.mxu0 0.0
    %v2025 = vand.u32 %v1379, 4294901760
    %v2026 = vsub.f32 %v1379, %v2025
    %2027 = vmatmul.mubr.f32.gmra.mrb[0].mxu0 %v2026
    %v2028 = vpop.f32.mrb[0].mxu0
    %v2029 = vadd.f32 %v1830, %v2028
    %v2030 = vpop.f32.mrb[0].mxu0
    %2031 = vmatprep.mubr.f32.mxu0 0.0
    %v2032 = vand.u32 %v1382, 4294901760
    %v2033 = vsub.f32 %v1382, %v2032
    %2034 = vmatmul.mubr.f32.gmra.mrb[0].mxu0 %v2033
    %v2035 = vpop.f32.mrb[0].mxu0
    %v2036 = vadd.f32 %v1836, %v2035
    %v2037 = vpop.f32.mrb[0].mxu0
    %2038 = vmatprep.mubr.f32.mxu0 0.0
    %v2039 = vand.u32 %v1385, 4294901760
    %v2040 = vsub.f32 %v1385, %v2039
    %2041 = vmatmul.mubr.f32.gmra.mrb[0].mxu0 %v2040
    %v2042 = vpop.f32.mrb[0].mxu0
    %v2043 = vadd.f32 %v1842, %v2042
    %v2044 = vpop.f32.mrb[0].mxu0
    %2045 = vdwg.mxu0
    %2046 = vmatprep.subr.mxu0 0.0
    %v2047 = vand.u32 %v1319, 4294901760
    %2048 = vmatpush1.msra.mxu0 %v2047
    %2049 = vmatprep.subr.mxu0 0.0
    %v2050 = vand.u32 %v1320, 4294901760
    %2051 = vmatpush1.msra.mxu0 %v2050
    %2052 = vmatprep.subr.mxu0 0.0
    %v2053 = vand.u32 %v1321, 4294901760
    %2054 = vmatpush1.msra.mxu0 %v2053
    %2055 = vmatprep.subr.mxu0 0.0
    %v2056 = vand.u32 %v1322, 4294901760
    %2057 = vmatpush1.msra.mxu0 %v2056
    %2058 = vmatprep.subr.mxu0 0.0
    %v2059 = vand.u32 %v1323, 4294901760
    %2060 = vmatpush1.msra.mxu0 %v2059
    %2061 = vmatprep.subr.mxu0 0.0
    %v2062 = vand.u32 %v1324, 4294901760
    %2063 = vmatpush1.msra.mxu0 %v2062
    %2064 = vmatprep.subr.mxu0 0.0
    %v2065 = vand.u32 %v1325, 4294901760
    %2066 = vmatpush1.msra.mxu0 %v2065
    %2067 = vmatprep.subr.mxu0 0.0
    %v2068 = vand.u32 %v1326, 4294901760
    %2069 = vmatpush1.msra.mxu0 %v2068
    %2070 = vmatprep.subr.mxu0 0.0
    %v2071 = vand.u32 %v1327, 4294901760
    %2072 = vmatpush1.msra.mxu0 %v2071
    %2073 = vmatprep.subr.mxu0 0.0
    %v2074 = vand.u32 %v1328, 4294901760
    %2075 = vmatpush1.msra.mxu0 %v2074
    %2076 = vmatprep.subr.mxu0 0.0
    %v2077 = vand.u32 %v1329, 4294901760
    %2078 = vmatpush1.msra.mxu0 %v2077
    %2079 = vmatprep.subr.mxu0 0.0
    %v2080 = vand.u32 %v1330, 4294901760
    %2081 = vmatpush1.msra.mxu0 %v2080
    %2082 = vmatprep.subr.mxu0 0.0
    %2083 = vmatpush1.msra.mxu0 0.0
    %2084 = vmatprep.subr.mxu0 0.0
    %2085 = vmatpush1.msra.mxu0 0.0
    %2086 = vmatprep.subr.mxu0 0.0
    %2087 = vmatpush1.msra.mxu0 0.0
    %2088 = vmatprep.subr.mxu0 0.0
    %2089 = vmatpush1.msra.mxu0 0.0
    %2090 = vmatprep.subr.mxu0 0.0
    %2091 = vmatpush1.msra.mxu0 0.0
    %2092 = vmatprep.subr.mxu0 0.0
    %2093 = vmatpush1.msra.mxu0 0.0
    %2094 = vmatprep.subr.mxu0 0.0
    %2095 = vmatpush1.msra.mxu0 0.0
    %2096 = vmatprep.subr.mxu0 0.0
    %2097 = vmatpush1.msra.mxu0 0.0
    %2098 = vmatprep.subr.mxu0 0.0
    %2099 = vmatpush1.msra.mxu0 0.0
    %2100 = vmatprep.subr.mxu0 0.0
    %2101 = vmatpush1.msra.mxu0 0.0
    %2102 = vmatprep.subr.mxu0 0.0
    %2103 = vmatpush1.msra.mxu0 0.0
    %2104 = vmatprep.subr.mxu0 0.0
    %2105 = vmatpush1.msra.mxu0 0.0
    %2106 = vmatprep.subr.mxu0 0.0
    %2107 = vmatpush1.msra.mxu0 0.0
    %2108 = vmatprep.subr.mxu0 0.0
    %2109 = vmatpush1.msra.mxu0 0.0
    %2110 = vmatprep.subr.mxu0 0.0
    %2111 = vmatpush1.msra.mxu0 0.0
    %2112 = vmatprep.subr.mxu0 0.0
    %2113 = vmatpush1.msra.mxu0 0.0
    %2114 = vmatprep.subr.mxu0 0.0
    %2115 = vmatpush1.msra.mxu0 0.0
    %2116 = vmatprep.subr.mxu0 0.0
    %2117 = vmatpush1.msra.mxu0 0.0
    %2118 = vmatprep.subr.mxu0 0.0
    %2119 = vmatpush1.msra.mxu0 0.0
    %2120 = vmatprep.subr.mxu0 0.0
    %2121 = vmatpush1.msra.mxu0 0.0
    %2122 = vmatprep.mubr.f32.mxu0 0.0
    %v2123 = vand.u32 %v1340, 4294901760
    %v2124 = vsub.f32 %v1340, %v2123
    %v2125 = vand.u32 %v2124, 4294901760
    %2126 = vmatmul.mubr.f32.gmra.mrb[0].mxu0 %v2125
    %v2127 = vpop.f32.mrb[0].mxu0
    %v2128 = vadd.f32 %v1938, %v2127
    %v2129 = vpop.f32.mrb[0].mxu0
    %2130 = vmatprep.mubr.f32.mxu0 0.0
    %v2131 = vand.u32 %v1343, 4294901760
    %v2132 = vsub.f32 %v1343, %v2131
    %v2133 = vand.u32 %v2132, 4294901760
    %2134 = vmatmul.mubr.f32.gmra.mrb[0].mxu0 %v2133
    %v2135 = vpop.f32.mrb[0].mxu0
    %v2136 = vadd.f32 %v1945, %v2135
    %v2137 = vpop.f32.mrb[0].mxu0
    %2138 = vmatprep.mubr.f32.mxu0 0.0
    %v2139 = vand.u32 %v1346, 4294901760
    %v2140 = vsub.f32 %v1346, %v2139
    %v2141 = vand.u32 %v2140, 4294901760
    %2142 = vmatmul.mubr.f32.gmra.mrb[0].mxu0 %v2141
    %v2143 = vpop.f32.mrb[0].mxu0
    %v2144 = vadd.f32 %v1952, %v2143
    %v2145 = vpop.f32.mrb[0].mxu0
    %2146 = vmatprep.mubr.f32.mxu0 0.0
    %v2147 = vand.u32 %v1349, 4294901760
    %v2148 = vsub.f32 %v1349, %v2147
    %v2149 = vand.u32 %v2148, 4294901760
    %2150 = vmatmul.mubr.f32.gmra.mrb[0].mxu0 %v2149
    %v2151 = vpop.f32.mrb[0].mxu0
    %v2152 = vadd.f32 %v1959, %v2151
    %v2153 = vpop.f32.mrb[0].mxu0
    %2154 = vmatprep.mubr.f32.mxu0 0.0
    %v2155 = vand.u32 %v1352, 4294901760
    %v2156 = vsub.f32 %v1352, %v2155
    %v2157 = vand.u32 %v2156, 4294901760
    %2158 = vmatmul.mubr.f32.gmra.mrb[0].mxu0 %v2157
    %v2159 = vpop.f32.mrb[0].mxu0
    %v2160 = vadd.f32 %v1966, %v2159
    %v2161 = vpop.f32.mrb[0].mxu0
    %2162 = vmatprep.mubr.f32.mxu0 0.0
    %v2163 = vand.u32 %v1355, 4294901760
    %v2164 = vsub.f32 %v1355, %v2163
    %v2165 = vand.u32 %v2164, 4294901760
    %2166 = vmatmul.mubr.f32.gmra.mrb[0].mxu0 %v2165
    %v2167 = vpop.f32.mrb[0].mxu0
    %v2168 = vadd.f32 %v1973, %v2167
    %v2169 = vpop.f32.mrb[0].mxu0
    %2170 = vmatprep.mubr.f32.mxu0 0.0
    %v2171 = vand.u32 %v1358, 4294901760
    %v2172 = vsub.f32 %v1358, %v2171
    %v2173 = vand.u32 %v2172, 4294901760
    %2174 = vmatmul.mubr.f32.gmra.mrb[0].mxu0 %v2173
    %v2175 = vpop.f32.mrb[0].mxu0
    %v2176 = vadd.f32 %v1980, %v2175
    %v2177 = vpop.f32.mrb[0].mxu0
    %2178 = vmatprep.mubr.f32.mxu0 0.0
    %v2179 = vand.u32 %v1361, 4294901760
    %v2180 = vsub.f32 %v1361, %v2179
    %v2181 = vand.u32 %v2180, 4294901760
    %2182 = vmatmul.mubr.f32.gmra.mrb[0].mxu0 %v2181
    %v2183 = vpop.f32.mrb[0].mxu0
    %v2184 = vadd.f32 %v1987, %v2183
    %v2185 = vpop.f32.mrb[0].mxu0
    %2186 = vmatprep.mubr.f32.mxu0 0.0
    %v2187 = vand.u32 %v1364, 4294901760
    %v2188 = vsub.f32 %v1364, %v2187
    %v2189 = vand.u32 %v2188, 4294901760
    %2190 = vmatmul.mubr.f32.gmra.mrb[0].mxu0 %v2189
    %v2191 = vpop.f32.mrb[0].mxu0
    %v2192 = vadd.f32 %v1994, %v2191
    %v2193 = vpop.f32.mrb[0].mxu0
    %2194 = vmatprep.mubr.f32.mxu0 0.0
    %v2195 = vand.u32 %v1367, 4294901760
    %v2196 = vsub.f32 %v1367, %v2195
    %v2197 = vand.u32 %v2196, 4294901760
    %2198 = vmatmul.mubr.f32.gmra.mrb[0].mxu0 %v2197
    %v2199 = vpop.f32.mrb[0].mxu0
    %v2200 = vadd.f32 %v2001, %v2199
    %v2201 = vpop.f32.mrb[0].mxu0
    %2202 = vmatprep.mubr.f32.mxu0 0.0
    %v2203 = vand.u32 %v1370, 4294901760
    %v2204 = vsub.f32 %v1370, %v2203
    %v2205 = vand.u32 %v2204, 4294901760
    %2206 = vmatmul.mubr.f32.gmra.mrb[0].mxu0 %v2205
    %v2207 = vpop.f32.mrb[0].mxu0
    %v2208 = vadd.f32 %v2008, %v2207
    %v2209 = vpop.f32.mrb[0].mxu0
    %2210 = vmatprep.mubr.f32.mxu0 0.0
    %v2211 = vand.u32 %v1373, 4294901760
    %v2212 = vsub.f32 %v1373, %v2211
    %v2213 = vand.u32 %v2212, 4294901760
    %2214 = vmatmul.mubr.f32.gmra.mrb[0].mxu0 %v2213
    %v2215 = vpop.f32.mrb[0].mxu0
    %v2216 = vadd.f32 %v2015, %v2215
    %v2217 = vpop.f32.mrb[0].mxu0
    %2218 = vmatprep.mubr.f32.mxu0 0.0
    %v2219 = vand.u32 %v1376, 4294901760
    %v2220 = vsub.f32 %v1376, %v2219
    %v2221 = vand.u32 %v2220, 4294901760
    %2222 = vmatmul.mubr.f32.gmra.mrb[0].mxu0 %v2221
    %v2223 = vpop.f32.mrb[0].mxu0
    %v2224 = vadd.f32 %v2022, %v2223
    %v2225 = vpop.f32.mrb[0].mxu0
    %2226 = vmatprep.mubr.f32.mxu0 0.0
    %v2227 = vand.u32 %v1379, 4294901760
    %v2228 = vsub.f32 %v1379, %v2227
    %v2229 = vand.u32 %v2228, 4294901760
    %2230 = vmatmul.mubr.f32.gmra.mrb[0].mxu0 %v2229
    %v2231 = vpop.f32.mrb[0].mxu0
    %v2232 = vadd.f32 %v2029, %v2231
    %v2233 = vpop.f32.mrb[0].mxu0
    %2234 = vmatprep.mubr.f32.mxu0 0.0
    %v2235 = vand.u32 %v1382, 4294901760
    %v2236 = vsub.f32 %v1382, %v2235
    %v2237 = vand.u32 %v2236, 4294901760
    %2238 = vmatmul.mubr.f32.gmra.mrb[0].mxu0 %v2237
    %v2239 = vpop.f32.mrb[0].mxu0
    %v2240 = vadd.f32 %v2036, %v2239
    %v2241 = vpop.f32.mrb[0].mxu0
    %2242 = vmatprep.mubr.f32.mxu0 0.0
    %v2243 = vand.u32 %v1385, 4294901760
    %v2244 = vsub.f32 %v1385, %v2243
    %v2245 = vand.u32 %v2244, 4294901760
    %2246 = vmatmul.mubr.f32.gmra.mrb[0].mxu0 %v2245
    %v2247 = vpop.f32.mrb[0].mxu0
    %v2248 = vadd.f32 %v2043, %v2247
    %v2249 = vpop.f32.mrb[0].mxu0
    %2250 = vdwg.mxu0
    %2251 = vmatprep.subr.mxu0 0.0
    %v2252 = vand.u32 %v1319, 4294901760
    %v2253 = vsub.f32 %v1319, %v2252
    %v2254 = vand.u32 %v2253, 4294901760
    %2255 = vmatpush1.msra.mxu0 %v2254
    %2256 = vmatprep.subr.mxu0 0.0
    %v2257 = vand.u32 %v1320, 4294901760
    %v2258 = vsub.f32 %v1320, %v2257
    %v2259 = vand.u32 %v2258, 4294901760
    %2260 = vmatpush1.msra.mxu0 %v2259
    %2261 = vmatprep.subr.mxu0 0.0
    %v2262 = vand.u32 %v1321, 4294901760
    %v2263 = vsub.f32 %v1321, %v2262
    %v2264 = vand.u32 %v2263, 4294901760
    %2265 = vmatpush1.msra.mxu0 %v2264
    %2266 = vmatprep.subr.mxu0 0.0
    %v2267 = vand.u32 %v1322, 4294901760
    %v2268 = vsub.f32 %v1322, %v2267
    %v2269 = vand.u32 %v2268, 4294901760
    %2270 = vmatpush1.msra.mxu0 %v2269
    %2271 = vmatprep.subr.mxu0 0.0
    %v2272 = vand.u32 %v1323, 4294901760
    %v2273 = vsub.f32 %v1323, %v2272
    %v2274 = vand.u32 %v2273, 4294901760
    %2275 = vmatpush1.msra.mxu0 %v2274
    %2276 = vmatprep.subr.mxu0 0.0
    %v2277 = vand.u32 %v1324, 4294901760
    %v2278 = vsub.f32 %v1324, %v2277
    %v2279 = vand.u32 %v2278, 4294901760
    %2280 = vmatpush1.msra.mxu0 %v2279
    %2281 = vmatprep.subr.mxu0 0.0
    %v2282 = vand.u32 %v1325, 4294901760
    %v2283 = vsub.f32 %v1325, %v2282
    %v2284 = vand.u32 %v2283, 4294901760
    %2285 = vmatpush1.msra.mxu0 %v2284
    %2286 = vmatprep.subr.mxu0 0.0
    %v2287 = vand.u32 %v1326, 4294901760
    %v2288 = vsub.f32 %v1326, %v2287
    %v2289 = vand.u32 %v2288, 4294901760
    %2290 = vmatpush1.msra.mxu0 %v2289
    %2291 = vmatprep.subr.mxu0 0.0
    %v2292 = vand.u32 %v1327, 4294901760
    %v2293 = vsub.f32 %v1327, %v2292
    %v2294 = vand.u32 %v2293, 4294901760
    %2295 = vmatpush1.msra.mxu0 %v2294
    %2296 = vmatprep.subr.mxu0 0.0
    %v2297 = vand.u32 %v1328, 4294901760
    %v2298 = vsub.f32 %v1328, %v2297
    %v2299 = vand.u32 %v2298, 4294901760
    %2300 = vmatpush1.msra.mxu0 %v2299
    %2301 = vmatprep.subr.mxu0 0.0
    %v2302 = vand.u32 %v1329, 4294901760
    %v2303 = vsub.f32 %v1329, %v2302
    %v2304 = vand.u32 %v2303, 4294901760
    %2305 = vmatpush1.msra.mxu0 %v2304
    %2306 = vmatprep.subr.mxu0 0.0
    %v2307 = vand.u32 %v1330, 4294901760
    %v2308 = vsub.f32 %v1330, %v2307
    %v2309 = vand.u32 %v2308, 4294901760
    %2310 = vmatpush1.msra.mxu0 %v2309
    %2311 = vmatprep.subr.mxu0 0.0
    %2312 = vmatpush1.msra.mxu0 0.0
    %2313 = vmatprep.subr.mxu0 0.0
    %2314 = vmatpush1.msra.mxu0 0.0
    %2315 = vmatprep.subr.mxu0 0.0
    %2316 = vmatpush1.msra.mxu0 0.0
    %2317 = vmatprep.subr.mxu0 0.0
    %2318 = vmatpush1.msra.mxu0 0.0
    %2319 = vmatprep.subr.mxu0 0.0
    %2320 = vmatpush1.msra.mxu0 0.0
    %2321 = vmatprep.subr.mxu0 0.0
    %2322 = vmatpush1.msra.mxu0 0.0
    %2323 = vmatprep.subr.mxu0 0.0
    %2324 = vmatpush1.msra.mxu0 0.0
    %2325 = vmatprep.subr.mxu0 0.0
    %2326 = vmatpush1.msra.mxu0 0.0
    %2327 = vmatprep.subr.mxu0 0.0
    %2328 = vmatpush1.msra.mxu0 0.0
    %2329 = vmatprep.subr.mxu0 0.0
    %2330 = vmatpush1.msra.mxu0 0.0
    %2331 = vmatprep.subr.mxu0 0.0
    %2332 = vmatpush1.msra.mxu0 0.0
    %2333 = vmatprep.subr.mxu0 0.0
    %2334 = vmatpush1.msra.mxu0 0.0
    %2335 = vmatprep.subr.mxu0 0.0
    %2336 = vmatpush1.msra.mxu0 0.0
    %2337 = vmatprep.subr.mxu0 0.0
    %2338 = vmatpush1.msra.mxu0 0.0
    %2339 = vmatprep.subr.mxu0 0.0
    %2340 = vmatpush1.msra.mxu0 0.0
    %2341 = vmatprep.subr.mxu0 0.0
    %2342 = vmatpush1.msra.mxu0 0.0
    %2343 = vmatprep.subr.mxu0 0.0
    %2344 = vmatpush1.msra.mxu0 0.0
    %2345 = vmatprep.subr.mxu0 0.0
    %2346 = vmatpush1.msra.mxu0 0.0
    %2347 = vmatprep.subr.mxu0 0.0
    %2348 = vmatpush1.msra.mxu0 0.0
    %2349 = vmatprep.subr.mxu0 0.0
    %2350 = vmatpush1.msra.mxu0 0.0
    %2351 = vmatprep.mubr.f32.mxu0 0.0
    %v2352 = vand.u32 %v1340, 4294901760
    %2353 = vmatmul.mubr.f32.gmra.mrb[0].mxu0 %v2352
    %v2354 = vpop.f32.mrb[0].mxu0
    %v2355 = vadd.f32 %v2128, %v2354
    %v2356 = vpop.f32.mrb[0].mxu0
    %2357 = vmatprep.mubr.f32.mxu0 0.0
    %v2358 = vand.u32 %v1343, 4294901760
    %2359 = vmatmul.mubr.f32.gmra.mrb[0].mxu0 %v2358
    %v2360 = vpop.f32.mrb[0].mxu0
    %v2361 = vadd.f32 %v2136, %v2360
    %v2362 = vpop.f32.mrb[0].mxu0
    %2363 = vmatprep.mubr.f32.mxu0 0.0
    %v2364 = vand.u32 %v1346, 4294901760
    %2365 = vmatmul.mubr.f32.gmra.mrb[0].mxu0 %v2364
    %v2366 = vpop.f32.mrb[0].mxu0
    %v2367 = vadd.f32 %v2144, %v2366
    %v2368 = vpop.f32.mrb[0].mxu0
    %2369 = vmatprep.mubr.f32.mxu0 0.0
    %v2370 = vand.u32 %v1349, 4294901760
    %2371 = vmatmul.mubr.f32.gmra.mrb[0].mxu0 %v2370
    %v2372 = vpop.f32.mrb[0].mxu0
    %v2373 = vadd.f32 %v2152, %v2372
    %v2374 = vpop.f32.mrb[0].mxu0
    %2375 = vmatprep.mubr.f32.mxu0 0.0
    %v2376 = vand.u32 %v1352, 4294901760
    %2377 = vmatmul.mubr.f32.gmra.mrb[0].mxu0 %v2376
    %v2378 = vpop.f32.mrb[0].mxu0
    %v2379 = vadd.f32 %v2160, %v2378
    %v2380 = vpop.f32.mrb[0].mxu0
    %2381 = vmatprep.mubr.f32.mxu0 0.0
    %v2382 = vand.u32 %v1355, 4294901760
    %2383 = vmatmul.mubr.f32.gmra.mrb[0].mxu0 %v2382
    %v2384 = vpop.f32.mrb[0].mxu0
    %v2385 = vadd.f32 %v2168, %v2384
    %v2386 = vpop.f32.mrb[0].mxu0
    %2387 = vmatprep.mubr.f32.mxu0 0.0
    %v2388 = vand.u32 %v1358, 4294901760
    %2389 = vmatmul.mubr.f32.gmra.mrb[0].mxu0 %v2388
    %v2390 = vpop.f32.mrb[0].mxu0
    %v2391 = vadd.f32 %v2176, %v2390
    %v2392 = vpop.f32.mrb[0].mxu0
    %2393 = vmatprep.mubr.f32.mxu0 0.0
    %v2394 = vand.u32 %v1361, 4294901760
    %2395 = vmatmul.mubr.f32.gmra.mrb[0].mxu0 %v2394
    %v2396 = vpop.f32.mrb[0].mxu0
    %v2397 = vadd.f32 %v2184, %v2396
    %v2398 = vpop.f32.mrb[0].mxu0
    %2399 = vmatprep.mubr.f32.mxu0 0.0
    %v2400 = vand.u32 %v1364, 4294901760
    %2401 = vmatmul.mubr.f32.gmra.mrb[0].mxu0 %v2400
    %v2402 = vpop.f32.mrb[0].mxu0
    %v2403 = vadd.f32 %v2192, %v2402
    %v2404 = vpop.f32.mrb[0].mxu0
    %2405 = vmatprep.mubr.f32.mxu0 0.0
    %v2406 = vand.u32 %v1367, 4294901760
    %2407 = vmatmul.mubr.f32.gmra.mrb[0].mxu0 %v2406
    %v2408 = vpop.f32.mrb[0].mxu0
    %v2409 = vadd.f32 %v2200, %v2408
    %v2410 = vpop.f32.mrb[0].mxu0
    %2411 = vmatprep.mubr.f32.mxu0 0.0
    %v2412 = vand.u32 %v1370, 4294901760
    %2413 = vmatmul.mubr.f32.gmra.mrb[0].mxu0 %v2412
    %v2414 = vpop.f32.mrb[0].mxu0
    %v2415 = vadd.f32 %v2208, %v2414
    %v2416 = vpop.f32.mrb[0].mxu0
    %2417 = vmatprep.mubr.f32.mxu0 0.0
    %v2418 = vand.u32 %v1373, 4294901760
    %2419 = vmatmul.mubr.f32.gmra.mrb[0].mxu0 %v2418
    %v2420 = vpop.f32.mrb[0].mxu0
    %v2421 = vadd.f32 %v2216, %v2420
    %v2422 = vpop.f32.mrb[0].mxu0
    %2423 = vmatprep.mubr.f32.mxu0 0.0
    %v2424 = vand.u32 %v1376, 4294901760
    %2425 = vmatmul.mubr.f32.gmra.mrb[0].mxu0 %v2424
    %v2426 = vpop.f32.mrb[0].mxu0
    %v2427 = vadd.f32 %v2224, %v2426
    %v2428 = vpop.f32.mrb[0].mxu0
    %2429 = vmatprep.mubr.f32.mxu0 0.0
    %v2430 = vand.u32 %v1379, 4294901760
    %2431 = vmatmul.mubr.f32.gmra.mrb[0].mxu0 %v2430
    %v2432 = vpop.f32.mrb[0].mxu0
    %v2433 = vadd.f32 %v2232, %v2432
    %v2434 = vpop.f32.mrb[0].mxu0
    %2435 = vmatprep.mubr.f32.mxu0 0.0
    %v2436 = vand.u32 %v1382, 4294901760
    %2437 = vmatmul.mubr.f32.gmra.mrb[0].mxu0 %v2436
    %v2438 = vpop.f32.mrb[0].mxu0
    %v2439 = vadd.f32 %v2240, %v2438
    %v2440 = vpop.f32.mrb[0].mxu0
    %2441 = vmatprep.mubr.f32.mxu0 0.0
    %v2442 = vand.u32 %v1385, 4294901760
    %2443 = vmatmul.mubr.f32.gmra.mrb[0].mxu0 %v2442
    %v2444 = vpop.f32.mrb[0].mxu0
    %v2445 = vadd.f32 %v2248, %v2444
    %v2446 = vpop.f32.mrb[0].mxu0
    %2447 = vdwg.mxu0
    %2448 = vmatprep.subr.mxu0 0.0
    %v2449 = vand.u32 %v1319, 4294901760
    %2450 = vmatpush1.msra.mxu0 %v2449
    %2451 = vmatprep.subr.mxu0 0.0
    %v2452 = vand.u32 %v1320, 4294901760
    %2453 = vmatpush1.msra.mxu0 %v2452
    %2454 = vmatprep.subr.mxu0 0.0
    %v2455 = vand.u32 %v1321, 4294901760
    %2456 = vmatpush1.msra.mxu0 %v2455
    %2457 = vmatprep.subr.mxu0 0.0
    %v2458 = vand.u32 %v1322, 4294901760
    %2459 = vmatpush1.msra.mxu0 %v2458
    %2460 = vmatprep.subr.mxu0 0.0
    %v2461 = vand.u32 %v1323, 4294901760
    %2462 = vmatpush1.msra.mxu0 %v2461
    %2463 = vmatprep.subr.mxu0 0.0
    %v2464 = vand.u32 %v1324, 4294901760
    %2465 = vmatpush1.msra.mxu0 %v2464
    %2466 = vmatprep.subr.mxu0 0.0
    %v2467 = vand.u32 %v1325, 4294901760
    %2468 = vmatpush1.msra.mxu0 %v2467
    %2469 = vmatprep.subr.mxu0 0.0
    %v2470 = vand.u32 %v1326, 4294901760
    %2471 = vmatpush1.msra.mxu0 %v2470
    %2472 = vmatprep.subr.mxu0 0.0
    %v2473 = vand.u32 %v1327, 4294901760
    %2474 = vmatpush1.msra.mxu0 %v2473
    %2475 = vmatprep.subr.mxu0 0.0
    %v2476 = vand.u32 %v1328, 4294901760
    %2477 = vmatpush1.msra.mxu0 %v2476
    %2478 = vmatprep.subr.mxu0 0.0
    %v2479 = vand.u32 %v1329, 4294901760
    %2480 = vmatpush1.msra.mxu0 %v2479
    %2481 = vmatprep.subr.mxu0 0.0
    %v2482 = vand.u32 %v1330, 4294901760
    %2483 = vmatpush1.msra.mxu0 %v2482
    %2484 = vmatprep.subr.mxu0 0.0
    %2485 = vmatpush1.msra.mxu0 0.0
    %2486 = vmatprep.subr.mxu0 0.0
    %2487 = vmatpush1.msra.mxu0 0.0
    %2488 = vmatprep.subr.mxu0 0.0
    %2489 = vmatpush1.msra.mxu0 0.0
    %2490 = vmatprep.subr.mxu0 0.0
    %2491 = vmatpush1.msra.mxu0 0.0
    %2492 = vmatprep.subr.mxu0 0.0
    %2493 = vmatpush1.msra.mxu0 0.0
    %2494 = vmatprep.subr.mxu0 0.0
    %2495 = vmatpush1.msra.mxu0 0.0
    %2496 = vmatprep.subr.mxu0 0.0
    %2497 = vmatpush1.msra.mxu0 0.0
    %2498 = vmatprep.subr.mxu0 0.0
    %2499 = vmatpush1.msra.mxu0 0.0
    %2500 = vmatprep.subr.mxu0 0.0
    %2501 = vmatpush1.msra.mxu0 0.0
    %2502 = vmatprep.subr.mxu0 0.0
    %2503 = vmatpush1.msra.mxu0 0.0
    %2504 = vmatprep.subr.mxu0 0.0
    %2505 = vmatpush1.msra.mxu0 0.0
    %2506 = vmatprep.subr.mxu0 0.0
    %2507 = vmatpush1.msra.mxu0 0.0
    %2508 = vmatprep.subr.mxu0 0.0
    %2509 = vmatpush1.msra.mxu0 0.0
    %2510 = vmatprep.subr.mxu0 0.0
    %2511 = vmatpush1.msra.mxu0 0.0
    %2512 = vmatprep.subr.mxu0 0.0
    %2513 = vmatpush1.msra.mxu0 0.0
    %2514 = vmatprep.subr.mxu0 0.0
    %2515 = vmatpush1.msra.mxu0 0.0
    %2516 = vmatprep.subr.mxu0 0.0
    %2517 = vmatpush1.msra.mxu0 0.0
    %2518 = vmatprep.subr.mxu0 0.0
    %2519 = vmatpush1.msra.mxu0 0.0
    %2520 = vmatprep.subr.mxu0 0.0
    %2521 = vmatpush1.msra.mxu0 0.0
    %2522 = vmatprep.subr.mxu0 0.0
    %2523 = vmatpush1.msra.mxu0 0.0
    %2524 = vmatprep.mubr.f32.mxu0 0.0
    %v2525 = vand.u32 %v1340, 4294901760
    %2526 = vmatmul.mubr.f32.gmra.mrb[0].mxu0 %v2525
    %v2527 = vpop.f32.mrb[0].mxu0
    %v2528 = vadd.f32 %v2355, %v2527
    %v2529 = vpop.f32.mrb[0].mxu0
    %2530 = vmatprep.mubr.f32.mxu0 0.0
    %v2531 = vand.u32 %v1343, 4294901760
    %2532 = vmatmul.mubr.f32.gmra.mrb[0].mxu0 %v2531
    %v2533 = vpop.f32.mrb[0].mxu0
    %v2534 = vadd.f32 %v2361, %v2533
    %v2535 = vpop.f32.mrb[0].mxu0
    %2536 = vmatprep.mubr.f32.mxu0 0.0
    %v2537 = vand.u32 %v1346, 4294901760
    %2538 = vmatmul.mubr.f32.gmra.mrb[0].mxu0 %v2537
    %v2539 = vpop.f32.mrb[0].mxu0
    %v2540 = vadd.f32 %v2367, %v2539
    %v2541 = vpop.f32.mrb[0].mxu0
    %2542 = vmatprep.mubr.f32.mxu0 0.0
    %v2543 = vand.u32 %v1349, 4294901760
    %2544 = vmatmul.mubr.f32.gmra.mrb[0].mxu0 %v2543
    %v2545 = vpop.f32.mrb[0].mxu0
    %v2546 = vadd.f32 %v2373, %v2545
    %v2547 = vpop.f32.mrb[0].mxu0
    %2548 = vmatprep.mubr.f32.mxu0 0.0
    %v2549 = vand.u32 %v1352, 4294901760
    %2550 = vmatmul.mubr.f32.gmra.mrb[0].mxu0 %v2549
    %v2551 = vpop.f32.mrb[0].mxu0
    %v2552 = vadd.f32 %v2379, %v2551
    %v2553 = vpop.f32.mrb[0].mxu0
    %2554 = vmatprep.mubr.f32.mxu0 0.0
    %v2555 = vand.u32 %v1355, 4294901760
    %2556 = vmatmul.mubr.f32.gmra.mrb[0].mxu0 %v2555
    %v2557 = vpop.f32.mrb[0].mxu0
    %v2558 = vadd.f32 %v2385, %v2557
    %v2559 = vpop.f32.mrb[0].mxu0
    %2560 = vmatprep.mubr.f32.mxu0 0.0
    %v2561 = vand.u32 %v1358, 4294901760
    %2562 = vmatmul.mubr.f32.gmra.mrb[0].mxu0 %v2561
    %v2563 = vpop.f32.mrb[0].mxu0
    %v2564 = vadd.f32 %v2391, %v2563
    %v2565 = vpop.f32.mrb[0].mxu0
    %2566 = vmatprep.mubr.f32.mxu0 0.0
    %v2567 = vand.u32 %v1361, 4294901760
    %2568 = vmatmul.mubr.f32.gmra.mrb[0].mxu0 %v2567
    %v2569 = vpop.f32.mrb[0].mxu0
    %v2570 = vadd.f32 %v2397, %v2569
    %v2571 = vpop.f32.mrb[0].mxu0
    %2572 = vmatprep.mubr.f32.mxu0 0.0
    %v2573 = vand.u32 %v1364, 4294901760
    %2574 = vmatmul.mubr.f32.gmra.mrb[0].mxu0 %v2573
    %v2575 = vpop.f32.mrb[0].mxu0
    %v2576 = vadd.f32 %v2403, %v2575
    %v2577 = vpop.f32.mrb[0].mxu0
    %2578 = vmatprep.mubr.f32.mxu0 0.0
    %v2579 = vand.u32 %v1367, 4294901760
    %2580 = vmatmul.mubr.f32.gmra.mrb[0].mxu0 %v2579
    %v2581 = vpop.f32.mrb[0].mxu0
    %v2582 = vadd.f32 %v2409, %v2581
    %v2583 = vpop.f32.mrb[0].mxu0
    %2584 = vmatprep.mubr.f32.mxu0 0.0
    %v2585 = vand.u32 %v1370, 4294901760
    %2586 = vmatmul.mubr.f32.gmra.mrb[0].mxu0 %v2585
    %v2587 = vpop.f32.mrb[0].mxu0
    %v2588 = vadd.f32 %v2415, %v2587
    %v2589 = vpop.f32.mrb[0].mxu0
    %2590 = vmatprep.mubr.f32.mxu0 0.0
    %v2591 = vand.u32 %v1373, 4294901760
    %2592 = vmatmul.mubr.f32.gmra.mrb[0].mxu0 %v2591
    %v2593 = vpop.f32.mrb[0].mxu0
    %v2594 = vadd.f32 %v2421, %v2593
    %v2595 = vpop.f32.mrb[0].mxu0
    %2596 = vmatprep.mubr.f32.mxu0 0.0
    %v2597 = vand.u32 %v1376, 4294901760
    %2598 = vmatmul.mubr.f32.gmra.mrb[0].mxu0 %v2597
    %v2599 = vpop.f32.mrb[0].mxu0
    %v2600 = vadd.f32 %v2427, %v2599
    %v2601 = vpop.f32.mrb[0].mxu0
    %2602 = vmatprep.mubr.f32.mxu0 0.0
    %v2603 = vand.u32 %v1379, 4294901760
    %2604 = vmatmul.mubr.f32.gmra.mrb[0].mxu0 %v2603
    %v2605 = vpop.f32.mrb[0].mxu0
    %v2606 = vadd.f32 %v2433, %v2605
    %v2607 = vpop.f32.mrb[0].mxu0
    %2608 = vmatprep.mubr.f32.mxu0 0.0
    %v2609 = vand.u32 %v1382, 4294901760
    %2610 = vmatmul.mubr.f32.gmra.mrb[0].mxu0 %v2609
    %v2611 = vpop.f32.mrb[0].mxu0
    %v2612 = vadd.f32 %v2439, %v2611
    %v2613 = vpop.f32.mrb[0].mxu0
    %2614 = vmatprep.mubr.f32.mxu0 0.0
    %v2615 = vand.u32 %v1385, 4294901760
    %2616 = vmatmul.mubr.f32.gmra.mrb[0].mxu0 %v2615
    %v2617 = vpop.f32.mrb[0].mxu0
    %v2618 = vadd.f32 %v2445, %v2617
    %v2619 = vpop.f32.mrb[0].mxu0
    %2620 = vdwg.mxu0
    %2621 = vst [vmem:[#allocation8] sm:$0xff] %v2528
    %2622 = vst [vmem:[#allocation8 + $0x8] sm:$0xff] %v2534
    %2623 = vst [vmem:[#allocation8 + $0x10] sm:$0xff] %v2540
    %2624 = vst [vmem:[#allocation8 + $0x18] sm:$0xff] %v2546
    %2625 = vst [vmem:[#allocation8 + $0x20] sm:$0xff] %v2552
    %2626 = vst [vmem:[#allocation8 + $0x28] sm:$0xff] %v2558
    %2627 = vst [vmem:[#allocation8 + $0x30] sm:$0xff] %v2564
    %2628 = vst [vmem:[#allocation8 + $0x38] sm:$0xff] %v2570
    %2629 = vst [vmem:[#allocation8 + $0x40] sm:$0xff] %v2576
    %2630 = vst [vmem:[#allocation8 + $0x48] sm:$0xff] %v2582
    %2631 = vst [vmem:[#allocation8 + $0x50] sm:$0xff] %v2588
    %2632 = vst [vmem:[#allocation8 + $0x58] sm:$0xff] %v2594
    %2633 = vst [vmem:[#allocation8 + $0x60] sm:$0xff] %v2600
    %2634 = vst [vmem:[#allocation8 + $0x68] sm:$0xff] %v2606
    %2635 = vst [vmem:[#allocation8 + $0x70] sm:$0xff] %v2612
    %2636 = vst [vmem:[#allocation8 + $0x78] sm:$0xff] %v2618
    // Predicated region
    $region34: #{tpu_custom_call.1} parent=1 // pred_check
      _
    $region35: #{tpu_custom_call.1} parent=1 // pred_check_branch
      %2638 = sbr.rel (0) target = $region37
    $region36: #{tpu_custom_call.1} parent=1 // pred_region
      %s2640 = ssub.s32 2048, 2048
      %2641 = vsyncadd [#allocation4], %s2640
      %s2642 = sshll.u32 [#allocation8], 4
      %s2643 = int_to_ptr.vmem [resolvable:$true] %s2642
      %2648 = dma.vmem_to_hbm [thread:$0]  %s2643, 2048, %s5, [#allocation4], 128, 128, 8
    $region37: #{tpu_custom_call.1} parent=1 // pred_fallthru
      _
    // Predicated region
    $region38: #{tpu_custom_call.1} parent=1 // pred_check
      _
    $region39: #{tpu_custom_call.1} parent=1 // pred_check_branch
      %2650 = sbr.rel (0) target = $region41
    $region40: #{tpu_custom_call.1} parent=1 // pred_region
      %2651 = dma.done [#allocation4], 2048
    $region41: #{tpu_custom_call.1} parent=1 // pred_fallthru
      _
    %2652 = vsyncpa [#allocation3], 1
    %2653 = vsyncpa [#allocation6], 1
    %2654 = vsyncpa [#allocation4], 1

</llo_original>
